<compile_context>
chip_gen: v7x
topology: tpu7x:2x2x1
jax: 0.10.0
libtpu: 0.0.40
codegen_flags: <defaults>
</compile_context>

<pallas_src>
import functools

import numpy as np
import jax
import jax.numpy as jnp
from jax.experimental import pallas as pl
from jax.experimental.pallas import tpu as pltpu


# ----------------------------------------------------------------------------
# constants / parameter construction (deterministic, matches __init__)
# ----------------------------------------------------------------------------

Q_50 = np.array(
    [[16, 11, 10, 16, 24, 40, 51, 61],
     [12, 12, 14, 19, 26, 58, 60, 55],
     [14, 13, 16, 24, 40, 57, 69, 56],
     [14, 17, 22, 29, 51, 87, 80, 62],
     [18, 22, 37, 56, 68, 109, 103, 77],
     [24, 35, 55, 64, 81, 104, 113, 92],
     [49, 64, 78, 87, 103, 121, 120, 101],
     [72, 92, 95, 98, 112, 100, 103, 99]], dtype=np.float32)


def dct_matrix_8():
    """scipy.fftpack.dct(np.eye(8), axis=0, norm='ortho') -- orthonormal DCT-II."""
    N = 8
    n = np.arange(N, dtype=np.float64)
    k = np.arange(N, dtype=np.float64)[:, None]
    M = np.cos(np.pi * (2.0 * n[None, :] + 1.0) * k / (2.0 * N))
    M *= np.sqrt(2.0 / N)
    M[0, :] *= 1.0 / np.sqrt(2.0)
    return M  # (8, 8)


def _pick_group(size):
    """Channels per grid step (lane width = group*32, lane-dense when possible)."""
    if size % 8 == 0 and size >= 16:
        return 8            # 256 lanes, >=2 grid steps (fills v6e/v7x MXU N)
    if size % 4 == 0 and size >= 8:
        return 4            # 128 lanes, >=2 grid steps (megacore on v7x)
    if size <= 32:
        return size         # single step; block lane extent == full extent
    raise ValueError(
        f"unsupported channel count {size}: need size <= 32 or size % 4 == 0")


# ----------------------------------------------------------------------------
# Pallas kernel: one group of G channels (all multipliers) per grid step
# ----------------------------------------------------------------------------

def _jpeg_dct_kernel(x_ref, r_ref, bd_ref, q_ref, qinv_ref, out_ref):
    x = x_ref[...] - 128.0          # (32, 32G)   level-shifted pixels
    q = q_ref[...]                  # (32, 32G)   tiled Q50
    qinv = qinv_ref[...]            # (32, 32G)   tiled 1/Q50 (host precomputed)

    hp = jax.lax.Precision.HIGHEST  # keep full fp32 accuracy through the MXU
    n_mult = r_ref.shape[0]

    for m in range(n_mult):         # n_mult is small & static -> unrolled
        r = r_ref[m]                # (32, 32)    kron(I_4,  W)
        bd = bd_ref[m]              # (32G, 32G)  kron(I_4G, W)

        # forward 2-D DCT of every 8x8 block:  D = W @ B @ W.T
        t = jnp.dot(r, x, preferred_element_type=jnp.float32, precision=hp)
        d = jax.lax.dot_general(     # t @ BD.T  (transpose taken by the MXU)
            t, bd, (((1,), (1,)), ((), ())),
            preferred_element_type=jnp.float32, precision=hp)

        # quantise / dequantise against Q50 (multiply by precomputed 1/q)
        t23 = q * jnp.round(d * qinv + 1e-6)

        # inverse 2-D DCT of every 8x8 block:  Y = W.T @ t23 @ W
        t = jnp.dot(t23, bd, preferred_element_type=jnp.float32, precision=hp)
        y = jax.lax.dot_general(     # R.T @ t
            r, t, (((0,), (0,)), ((), ())),
            preferred_element_type=jnp.float32, precision=hp)

        out_ref[m] = jnp.round(y) + 128.0


@functools.partial(jax.jit, static_argnames=("size", "group"))
def _jpeg_forward(input_img, r, bd, q, qinv, size, group):
    """All multipliers + all channels in a single pallas_call (lane-dense)."""
    n_mult = r.shape[0]
    g32 = group * 32
    n_groups = size // group

    # lane-dense layout: image rows on sublanes, channels stacked along lanes
    # x2d[row, c*32 + col] = img[c, row, col]
    x2d = jnp.transpose(input_img[0].astype(jnp.float32),
                        (1, 0, 2)).reshape(32, size * 32)

    out = pl.pallas_call(
        _jpeg_dct_kernel,
        out_shape=jax.ShapeDtypeStruct((n_mult, 32, size * 32), jnp.float32),
        grid=(n_groups,),
        in_specs=[
            pl.BlockSpec((32, g32), lambda gi: (0, gi)),             # image slab
            pl.BlockSpec((n_mult, 32, 32), lambda gi: (0, 0, 0)),    # R (all mults)
            pl.BlockSpec((n_mult, g32, g32), lambda gi: (0, 0, 0)),  # BD (all mults)
            pl.BlockSpec((32, g32), lambda gi: (0, 0)),              # Q50 tiled
            pl.BlockSpec((32, g32), lambda gi: (0, 0)),              # 1/Q50 tiled
        ],
        out_specs=pl.BlockSpec((n_mult, 32, g32), lambda gi: (0, 0, gi)),
        compiler_params=pltpu.CompilerParams(
            dimension_semantics=("parallel",)),
    )(x2d, r, bd, q, qinv)

    # back to (n_mult, 1, size, 32, 32)
    out = out.reshape(n_mult, 32, size, 32).transpose(0, 2, 1, 3)
    return out[:, None]


# ----------------------------------------------------------------------------
# Forward_Model equivalent
# ----------------------------------------------------------------------------

class ForwardModelPallas:
    def __init__(self, size=4, mul_approx_func_arr=(1,)):
        self.size = int(size)
        self.mult_list = list(mul_approx_func_arr)
        m = len(self.mult_list)

        dct_mat = dct_matrix_8()                                   # (8, 8) f64
        w_one = dct_mat.reshape(1, 64)
        # parameters kept for fidelity (never trained in this script)
        self.weight = np.tile(w_one, (m, 1)).astype(np.float32)            # (m, 64)
        self.scale = np.tile(np.array([1.0]), (m, 1)).astype(np.float32)   # (m, 1)
        self.weight_factor = np.tile(np.array([65535.0]), (m, 1))          # (m, 1)
        self.weight_orig = w_one.astype(np.float32)

        self.group = _pick_group(self.size)
        g = self.group

        # forward() clamps weight / weight_factor in place on every call; the
        # parameters are never updated here, so precompute the clamped
        # block-diagonal DCT operators once.  The clamped weight_factor
        # (65536 or 256, a power of two) cancels exactly on the exact
        # multiplier path, so the kernel does not need it at all.  Only R and
        # BD are shipped; their transposes are taken inside the kernel via
        # dot_general (halves operator HBM->VMEM traffic).
        eye4 = np.eye(4, dtype=np.float64)
        eyeg = np.eye(4 * g, dtype=np.float64)
        r_all, bd_all = [], []
        for ii in range(m):
            w = np.clip(self.weight[ii].astype(np.float64).reshape(8, 8),
                        -0.999, 0.999)
            r_all.append(np.kron(eye4, w))
            bd_all.append(np.kron(eyeg, w))
        self._r = jnp.asarray(np.stack(r_all), jnp.float32)       # (m, 32, 32)
        self._bd = jnp.asarray(np.stack(bd_all), jnp.float32)     # (m, 32g, 32g)

        q_tiled = np.tile(Q_50.astype(np.float64), (4, 4 * g))    # (32, 32g)
        self._q = jnp.asarray(q_tiled, jnp.float32)
        self._qinv = jnp.asarray(1.0 / q_tiled, jnp.float32)

    def __call__(self, input_img, mults=None):
        m = len(self.mult_list)
        active = [ii for ii in range(m) if mults is None or ii in mults]

        if len(active) == m:
            # common path: everything (kernel + layout plumbing) in one jit
            return _jpeg_forward(input_img, self._r, self._bd,
                                 self._q, self._qinv,
                                 size=self.size, group=self.group)

        out = jnp.zeros((m, 1, self.size, 32, 32), jnp.float32)
        if active:
            idx = jnp.asarray(active, jnp.int32)
            out_act = _jpeg_forward(input_img,
                                    jnp.take(self._r, idx, axis=0),
                                    jnp.take(self._bd, idx, axis=0),
                                    self._q, self._qinv,
                                    size=self.size, group=self.group)
            out = out.at[np.asarray(active)].set(out_act)
        return out                                # (m, 1, size, 32, 32)


# ----------------------------------------------------------------------------
# NumPy float64 reference (approx_dct with an exact multiplier)
# ----------------------------------------------------------------------------

def _reference_forward(inp, size):
    w = np.clip(dct_matrix_8(), -0.999, 0.999)
    q = Q_50.astype(np.float64)
    img = np.asarray(inp)[0].astype(np.float64) - 128.0
    out = np.zeros((1, size, 32, 32), dtype=np.float64)
    for i in range(size):
        for h in range(4):
            for v in range(4):
                b = img[i, h * 8:(h + 1) * 8, v * 8:(v + 1) * 8]
                d = w @ b @ w.T
                t = np.round(d / q + 1e-6)
                y = w.T @ (q * t) @ w
                out[0, i, h * 8:(h + 1) * 8, v * 8:(v + 1) * 8] = np.round(y) + 128.0
    return out


# ----------------------------------------------------------------------------
# main
# ----------------------------------------------------------------------------

if __name__ == "__main__":
    key = jax.random.PRNGKey(0)
    size = 4                                                       # channels

    # synthetic 8-bit-like image batch: (1, size, 32, 32), values in [0, 255]
    inp = jnp.round(jax.random.uniform(key, (1, size, 32, 32),
                                       jnp.float32, 0.0, 255.0))

    model = ForwardModelPallas(size=size, mul_approx_func_arr=[1])
    out = model(inp)
    out = jax.block_until_ready(out)

    assert out.shape == (1, 1, size, 32, 32), out.shape
    assert out.dtype == jnp.float32
    assert bool(jnp.all(jnp.isfinite(out)))

    # correctness vs float64 reference.  fp32-vs-fp64 rounding can flip a rare
    # quantisation-boundary coefficient, which re-renders a whole 8x8 block
    # (64/4096 = 1.6% of elements), so allow a couple of such flips while also
    # requiring the mean error to stay small.
    ref = _reference_forward(np.asarray(inp), size)
    diff = np.abs(np.asarray(out)[0, 0] - ref[0])
    mismatch = float(np.mean(diff > 0.5))
    assert mismatch < 0.035, (mismatch, float(diff.max()))
    assert float(diff.mean()) < 0.2, float(diff.mean())

    print("KERNEL_OK")
</pallas_src>

<mosaic_0001>
module attributes {stable_mosaic.version = 11 : i64} {
  func.func @_jpeg_dct_kernel(%arg0: i32, %arg1: memref<32x128xf32, #tpu.memory_space<vmem>>, %arg2: memref<1x32x32xf32, #tpu.memory_space<vmem>>, %arg3: memref<1x128x128xf32, #tpu.memory_space<vmem>>, %arg4: memref<32x128xf32, #tpu.memory_space<vmem>>, %arg5: memref<32x128xf32, #tpu.memory_space<vmem>>, %arg6: memref<1x32x128xf32, #tpu.memory_space<vmem>>) attributes {dimension_semantics = [#tpu.dimension_semantics<parallel>], iteration_bounds = array<i64: 1>, scalar_prefetch = 0 : i64, scratch_operands = 0 : i64, tpu.core_type = #tpu.core_type<tc>, window_params = [{transform_indices = @transform_0, window_bounds = array<i64: 32, 128>}, {pipeline_mode = #tpu.pipeline_mode<synchronous>, transform_indices = @transform_1, window_bounds = array<i64: 1, 32, 32>}, {pipeline_mode = #tpu.pipeline_mode<synchronous>, transform_indices = @transform_2, window_bounds = array<i64: 1, 128, 128>}, {pipeline_mode = #tpu.pipeline_mode<synchronous>, transform_indices = @transform_3, window_bounds = array<i64: 32, 128>}, {pipeline_mode = #tpu.pipeline_mode<synchronous>, transform_indices = @transform_4, window_bounds = array<i64: 32, 128>}, {transform_indices = @transform_5, window_bounds = array<i64: 1, 32, 128>}]} {
    %c0 = arith.constant 0 : index
    %c0_0 = arith.constant 0 : index
    %0 = vector.load %arg1[%c0, %c0_0] : memref<32x128xf32, #tpu.memory_space<vmem>>, vector<32x128xf32>
    %cst = arith.constant 1.280000e+02 : f32
    %1 = vector.broadcast %cst : f32 to vector<32x128xf32>
    %2 = arith.subf %0, %1 : vector<32x128xf32>
    %c0_1 = arith.constant 0 : index
    %c0_2 = arith.constant 0 : index
    %3 = vector.load %arg4[%c0_1, %c0_2] : memref<32x128xf32, #tpu.memory_space<vmem>>, vector<32x128xf32>
    %c0_3 = arith.constant 0 : index
    %c0_4 = arith.constant 0 : index
    %4 = vector.load %arg5[%c0_3, %c0_4] : memref<32x128xf32, #tpu.memory_space<vmem>>, vector<32x128xf32>
    %c0_5 = arith.constant 0 : index
    %c0_6 = arith.constant 0 : index
    %c0_7 = arith.constant 0 : index
    %5 = vector.load %arg2[%c0_5, %c0_6, %c0_7] : memref<1x32x32xf32, #tpu.memory_space<vmem>>, vector<1x32x32xf32>
    %6 = vector.shape_cast %5 : vector<1x32x32xf32> to vector<32x32xf32>
    %c0_8 = arith.constant 0 : index
    %c0_9 = arith.constant 0 : index
    %c0_10 = arith.constant 0 : index
    %7 = vector.load %arg3[%c0_8, %c0_9, %c0_10] : memref<1x128x128xf32, #tpu.memory_space<vmem>>, vector<1x128x128xf32>
    %8 = vector.shape_cast %7 : vector<1x128x128xf32> to vector<128x128xf32>
    %cst_11 = arith.constant dense<0.000000e+00> : vector<32x128xf32>
    %9 = tpu.matmul %6, %2, %cst_11 {dimension_numbers = #tpu.dot_dimension_numbers<[1], [0], [0], [1], [0, 0, 1, 1], [], []>, precision = #tpu.contract_precision<fp32>} : vector<32x32xf32>, vector<32x128xf32>, vector<32x128xf32> -> vector<32x128xf32>
    %cst_12 = arith.constant dense<0.000000e+00> : vector<32x128xf32>
    %10 = tpu.matmul %9, %8, %cst_12 {dimension_numbers = #tpu.dot_dimension_numbers<[1], [1], [0], [0], [0, 0, 1, 0], [], []>, precision = #tpu.contract_precision<fp32>} : vector<32x128xf32>, vector<128x128xf32>, vector<32x128xf32> -> vector<32x128xf32>
    %11 = arith.mulf %10, %4 : vector<32x128xf32>
    %cst_13 = arith.constant 9.99999997E-7 : f32
    %12 = vector.broadcast %cst_13 : f32 to vector<32x128xf32>
    %13 = arith.addf %11, %12 : vector<32x128xf32>
    %14 = math.roundeven %13 : vector<32x128xf32>
    %15 = arith.mulf %3, %14 : vector<32x128xf32>
    %cst_14 = arith.constant dense<0.000000e+00> : vector<32x128xf32>
    %16 = tpu.matmul %15, %8, %cst_14 {dimension_numbers = #tpu.dot_dimension_numbers<[1], [0], [0], [1], [0, 0, 1, 1], [], []>, precision = #tpu.contract_precision<fp32>} : vector<32x128xf32>, vector<128x128xf32>, vector<32x128xf32> -> vector<32x128xf32>
    %cst_15 = arith.constant dense<0.000000e+00> : vector<32x128xf32>
    %17 = tpu.matmul %6, %16, %cst_15 {dimension_numbers = #tpu.dot_dimension_numbers<[0], [0], [1], [1], [0, 1, 1, 1], [], []>, precision = #tpu.contract_precision<fp32>} : vector<32x32xf32>, vector<32x128xf32>, vector<32x128xf32> -> vector<32x128xf32>
    %18 = math.roundeven %17 : vector<32x128xf32>
    %cst_16 = arith.constant 1.280000e+02 : f32
    %19 = vector.broadcast %cst_16 : f32 to vector<32x128xf32>
    %20 = arith.addf %18, %19 : vector<32x128xf32>
    %c0_17 = arith.constant 0 : index
    %c0_18 = arith.constant 0 : index
    %c0_19 = arith.constant 0 : index
    %21 = vector.load %arg6[%c0_17, %c0_18, %c0_19] : memref<1x32x128xf32, #tpu.memory_space<vmem>>, vector<1x32x128xf32>
    %22 = vector.shape_cast %21 : vector<1x32x128xf32> to vector<32x128xf32>
    %23 = vector.shape_cast %20 : vector<32x128xf32> to vector<1x32x128xf32>
    tpu.vector_store %arg6[%c0_17, %c0_18, %c0_19], %23 {strides = array<i32>} : memref<1x32x128xf32, #tpu.memory_space<vmem>>, vector<1x32x128xf32>,
    return
  }
  func.func @transform_0(%arg0: i32) -> (i32, i32) {
    %c0_i32 = arith.constant 0 : i32
    %c0_i32_0 = arith.constant 0 : i32
    return %c0_i32, %arg0 : i32, i32
  }
  func.func @transform_1(%arg0: i32) -> (i32, i32, i32) {
    %c0_i32 = arith.constant 0 : i32
    %c0_i32_0 = arith.constant 0 : i32
    %c0_i32_1 = arith.constant 0 : i32
    %c0_i32_2 = arith.constant 0 : i32
    return %c0_i32, %c0_i32_0, %c0_i32_1 : i32, i32, i32
  }
  func.func @transform_2(%arg0: i32) -> (i32, i32, i32) {
    %c0_i32 = arith.constant 0 : i32
    %c0_i32_0 = arith.constant 0 : i32
    %c0_i32_1 = arith.constant 0 : i32
    %c0_i32_2 = arith.constant 0 : i32
    return %c0_i32, %c0_i32_0, %c0_i32_1 : i32, i32, i32
  }
  func.func @transform_3(%arg0: i32) -> (i32, i32) {
    %c0_i32 = arith.constant 0 : i32
    %c0_i32_0 = arith.constant 0 : i32
    %c0_i32_1 = arith.constant 0 : i32
    return %c0_i32, %c0_i32_0 : i32, i32
  }
  func.func @transform_4(%arg0: i32) -> (i32, i32) {
    %c0_i32 = arith.constant 0 : i32
    %c0_i32_0 = arith.constant 0 : i32
    %c0_i32_1 = arith.constant 0 : i32
    return %c0_i32, %c0_i32_0 : i32, i32
  }
  func.func @transform_5(%arg0: i32) -> (i32, i32, i32) {
    %c0_i32 = arith.constant 0 : i32
    %c0_i32_0 = arith.constant 0 : i32
    %c0_i32_1 = arith.constant 0 : i32
    return %c0_i32, %c0_i32_0, %arg0 : i32, i32, i32
  }
}

</mosaic_0001>

<llo_original>
// kernel: _jpeg_forward.1
$region0: #{_jpeg_forward.1}
  #allocation0 [shape = 'u32[]', space=smem, size = 0x4, offset = 0x4, fixed_abs, tag = 'smem constant byte address 0x4 - core index']
  #allocation1 [shape = 'u32[144,128]{1,0:T(1,128)}', space=vmem, size = 0x12000, scoped, tag = 'internal scratch']
  %s0 = inlined_call_operand.vmem [shape: f32[32,128], index: 0, kind: input, shape index: {}]
  %s1 = inlined_call_operand.vmem [shape: f32[1,32,32], index: 1, kind: input, shape index: {}]
  %s2 = inlined_call_operand.vmem [shape: f32[1,128,128], index: 2, kind: input, shape index: {}]
  %s3 = inlined_call_operand.vmem [shape: f32[32,128], index: 3, kind: input, shape index: {}]
  %s4 = inlined_call_operand.vmem [shape: f32[32,128], index: 4, kind: input, shape index: {}]
  %s5 = inlined_call_operand.vmem [shape: f32[1,32,128], index: 5, kind: output, shape index: {}]
  %s6 = sld [smem:[#allocation0]]
  $region30: #{_jpeg_forward.1} parent=0
    _
  %s8 = ssub.s32 1, %s6
  %s9 = scalar_select 0, %s8, %s6
  // Predicated region
  $region2: #{_jpeg_forward.1} parent=0 // pred_check
    _
  $region3: #{_jpeg_forward.1} parent=0 // pred_check_branch
    %11 = sbr.rel (0) target = $region5
  $region4: #{_jpeg_forward.1} parent=0 // pred_region
    _
  $region5: #{_jpeg_forward.1} parent=0 // pred_fallthru
    _
  // Predicated region
  $region6: #{_jpeg_forward.1} parent=0 // pred_check
    _
  $region7: #{_jpeg_forward.1} parent=0 // pred_check_branch
    %13 = sbr.rel (0) target = $region9
  $region8: #{_jpeg_forward.1} parent=0 // pred_region
    _
  $region9: #{_jpeg_forward.1} parent=0 // pred_fallthru
    _
  // Predicated region
  $region10: #{_jpeg_forward.1} parent=0 // pred_check
    _
  $region11: #{_jpeg_forward.1} parent=0 // pred_check_branch
    %15 = sbr.rel (0) target = $region13
  $region12: #{_jpeg_forward.1} parent=0 // pred_region
    _
  $region13: #{_jpeg_forward.1} parent=0 // pred_fallthru
    _
  // Predicated region
  $region14: #{_jpeg_forward.1} parent=0 // pred_check
    _
  $region15: #{_jpeg_forward.1} parent=0 // pred_check_branch
    %17 = sbr.rel (0) target = $region17
  $region16: #{_jpeg_forward.1} parent=0 // pred_region
    _
  $region17: #{_jpeg_forward.1} parent=0 // pred_fallthru
    _
  // Predicated region
  $region18: #{_jpeg_forward.1} parent=0 // pred_check
    _
  $region19: #{_jpeg_forward.1} parent=0 // pred_check_branch
    %19 = sbr.rel (0) target = $region21
  $region20: #{_jpeg_forward.1} parent=0 // pred_region
    _
  $region21: #{_jpeg_forward.1} parent=0 // pred_fallthru
    _
  %v20 = vld [vmem:[%s0] sm:$0xff]
  %v21 = vld [vmem:[%s0 + $0x8] sm:$0xff]
  %v22 = vld [vmem:[%s0 + $0x10] sm:$0xff]
  %v23 = vld [vmem:[%s0 + $0x18] sm:$0xff]
  %v24 = vsub.f32 %v20, 128.0
  %v25 = vsub.f32 %v21, 128.0
  %v26 = vsub.f32 %v22, 128.0
  %v27 = vsub.f32 %v23, 128.0
  %v28 = vld [vmem:[%s3] sm:$0xff]
  %v29 = vld [vmem:[%s3 + $0x8] sm:$0xff]
  %v30 = vld [vmem:[%s3 + $0x10] sm:$0xff]
  %v31 = vld [vmem:[%s3 + $0x18] sm:$0xff]
  %v32 = vld [vmem:[%s4] sm:$0xff]
  %v33 = vld [vmem:[%s4 + $0x8] sm:$0xff]
  %v34 = vld [vmem:[%s4 + $0x10] sm:$0xff]
  %v35 = vld [vmem:[%s4 + $0x18] sm:$0xff]
  %v36 = vld [vmem:[%s1] sm:$0xff]
  %v37 = vld [vmem:[%s1 + $0x8] sm:$0xff]
  %v38 = vld [vmem:[%s1 + $0x10] sm:$0xff]
  %v39 = vld [vmem:[%s1 + $0x18] sm:$0xff]
  %v40 = vld [vmem:[%s2] sm:$0xff]
  %v41 = vld [vmem:[%s2 + $0x8] sm:$0xff]
  %v42 = vld [vmem:[%s2 + $0x10] sm:$0xff]
  %v43 = vld [vmem:[%s2 + $0x18] sm:$0xff]
  %v44 = vld [vmem:[%s2 + $0x20] sm:$0xff]
  %v45 = vld [vmem:[%s2 + $0x28] sm:$0xff]
  %v46 = vld [vmem:[%s2 + $0x30] sm:$0xff]
  %v47 = vld [vmem:[%s2 + $0x38] sm:$0xff]
  %v48 = vld [vmem:[%s2 + $0x40] sm:$0xff]
  %v49 = vld [vmem:[%s2 + $0x48] sm:$0xff]
  %v50 = vld [vmem:[%s2 + $0x50] sm:$0xff]
  %v51 = vld [vmem:[%s2 + $0x58] sm:$0xff]
  %v52 = vld [vmem:[%s2 + $0x60] sm:$0xff]
  %v53 = vld [vmem:[%s2 + $0x68] sm:$0xff]
  %v54 = vld [vmem:[%s2 + $0x70] sm:$0xff]
  %v55 = vld [vmem:[%s2 + $0x78] sm:$0xff]
  %vm56 = vcmask 261120
  %v58 = vsel %vm56, %v36, 0
  %v61 = vsel %vm56, %v37, 0
  %v64 = vsel %vm56, %v38, 0
  %v67 = vsel %vm56, %v39, 0
  %69 = vmatprep.subr.mxu0 0.0
  %v70 = vand.u32 %v24, 4294901760
  %71 = vmatpush1.msra.mxu0 %v70
  %72 = vmatprep.subr.mxu0 0.0
  %v73 = vand.u32 %v25, 4294901760
  %74 = vmatpush1.msra.mxu0 %v73
  %75 = vmatprep.subr.mxu0 0.0
  %v76 = vand.u32 %v26, 4294901760
  %77 = vmatpush1.msra.mxu0 %v76
  %78 = vmatprep.subr.mxu0 0.0
  %v79 = vand.u32 %v27, 4294901760
  %80 = vmatpush1.msra.mxu0 %v79
  %81 = vmatprep.subr.mxu0 0.0
  %82 = vmatpush1.msra.mxu0 0.0
  %83 = vmatprep.subr.mxu0 0.0
  %84 = vmatpush1.msra.mxu0 0.0
  %85 = vmatprep.subr.mxu0 0.0
  %86 = vmatpush1.msra.mxu0 0.0
  %87 = vmatprep.subr.mxu0 0.0
  %88 = vmatpush1.msra.mxu0 0.0
  %89 = vmatprep.subr.mxu0 0.0
  %90 = vmatpush1.msra.mxu0 0.0
  %91 = vmatprep.subr.mxu0 0.0
  %92 = vmatpush1.msra.mxu0 0.0
  %93 = vmatprep.subr.mxu0 0.0
  %94 = vmatpush1.msra.mxu0 0.0
  %95 = vmatprep.subr.mxu0 0.0
  %96 = vmatpush1.msra.mxu0 0.0
  %97 = vmatprep.subr.mxu0 0.0
  %98 = vmatpush1.msra.mxu0 0.0
  %99 = vmatprep.subr.mxu0 0.0
  %100 = vmatpush1.msra.mxu0 0.0
  %101 = vmatprep.subr.mxu0 0.0
  %102 = vmatpush1.msra.mxu0 0.0
  %103 = vmatprep.subr.mxu0 0.0
  %104 = vmatpush1.msra.mxu0 0.0
  %105 = vmatprep.subr.mxu0 0.0
  %106 = vmatpush1.msra.mxu0 0.0
  %107 = vmatprep.subr.mxu0 0.0
  %108 = vmatpush1.msra.mxu0 0.0
  %109 = vmatprep.subr.mxu0 0.0
  %110 = vmatpush1.msra.mxu0 0.0
  %111 = vmatprep.subr.mxu0 0.0
  %112 = vmatpush1.msra.mxu0 0.0
  %113 = vmatprep.subr.mxu0 0.0
  %114 = vmatpush1.msra.mxu0 0.0
  %115 = vmatprep.subr.mxu0 0.0
  %116 = vmatpush1.msra.mxu0 0.0
  %117 = vmatprep.subr.mxu0 0.0
  %118 = vmatpush1.msra.mxu0 0.0
  %119 = vmatprep.subr.mxu0 0.0
  %120 = vmatpush1.msra.mxu0 0.0
  %121 = vmatprep.subr.mxu0 0.0
  %122 = vmatpush1.msra.mxu0 0.0
  %123 = vmatprep.subr.mxu0 0.0
  %124 = vmatpush1.msra.mxu0 0.0
  %125 = vmatprep.subr.mxu0 0.0
  %126 = vmatpush1.msra.mxu0 0.0
  %127 = vmatprep.subr.mxu0 0.0
  %128 = vmatpush1.msra.mxu0 0.0
  %129 = vmatprep.subr.mxu0 0.0
  %130 = vmatpush1.msra.mxu0 0.0
  %131 = vmatprep.subr.mxu0 0.0
  %132 = vmatpush1.msra.mxu0 0.0
  %133 = vmatprep.subr.mxu0 0.0
  %134 = vmatpush1.msra.mxu0 0.0
  %135 = vmatprep.subr.mxu0 0.0
  %136 = vmatpush1.msra.mxu0 0.0
  %137 = vmatprep.mubr.f32.mxu0 0.0
  %v138 = vand.u32 %v58, 4294901760
  %v139 = vsub.f32 %v58, %v138
  %v140 = vand.u32 %v139, 4294901760
  %v141 = vsub.f32 %v139, %v140
  %v142 = vand.u32 %v141, 4294901760
  %143 = vmatmul.mubr.f32.gmra.mrb[0].mxu0 %v142
  %v144 = vpop.f32.mrb[0].mxu0
  %v145 = vadd.f32 0.0, %v144
  %v146 = vpop.f32.mrb[0].mxu0
  %147 = vmatprep.mubr.f32.mxu0 0.0
  %v148 = vand.u32 %v61, 4294901760
  %v149 = vsub.f32 %v61, %v148
  %v150 = vand.u32 %v149, 4294901760
  %v151 = vsub.f32 %v149, %v150
  %v152 = vand.u32 %v151, 4294901760
  %153 = vmatmul.mubr.f32.gmra.mrb[0].mxu0 %v152
  %v154 = vpop.f32.mrb[0].mxu0
  %v155 = vadd.f32 0.0, %v154
  %v156 = vpop.f32.mrb[0].mxu0
  %157 = vmatprep.mubr.f32.mxu0 0.0
  %v158 = vand.u32 %v64, 4294901760
  %v159 = vsub.f32 %v64, %v158
  %v160 = vand.u32 %v159, 4294901760
  %v161 = vsub.f32 %v159, %v160
  %v162 = vand.u32 %v161, 4294901760
  %163 = vmatmul.mubr.f32.gmra.mrb[0].mxu0 %v162
  %v164 = vpop.f32.mrb[0].mxu0
  %v165 = vadd.f32 0.0, %v164
  %v166 = vpop.f32.mrb[0].mxu0
  %167 = vmatprep.mubr.f32.mxu0 0.0
  %v168 = vand.u32 %v67, 4294901760
  %v169 = vsub.f32 %v67, %v168
  %v170 = vand.u32 %v169, 4294901760
  %v171 = vsub.f32 %v169, %v170
  %v172 = vand.u32 %v171, 4294901760
  %173 = vmatmul.mubr.f32.gmra.mrb[0].mxu0 %v172
  %v174 = vpop.f32.mrb[0].mxu0
  %v175 = vadd.f32 0.0, %v174
  %v176 = vpop.f32.mrb[0].mxu0
  %177 = vdwg.mxu0
  %178 = vmatprep.subr.mxu0 0.0
  %v179 = vand.u32 %v24, 4294901760
  %v180 = vsub.f32 %v24, %v179
  %v181 = vand.u32 %v180, 4294901760
  %v182 = vsub.f32 %v180, %v181
  %v183 = vand.u32 %v182, 4294901760
  %184 = vmatpush1.msra.mxu0 %v183
  %185 = vmatprep.subr.mxu0 0.0
  %v186 = vand.u32 %v25, 4294901760
  %v187 = vsub.f32 %v25, %v186
  %v188 = vand.u32 %v187, 4294901760
  %v189 = vsub.f32 %v187, %v188
  %v190 = vand.u32 %v189, 4294901760
  %191 = vmatpush1.msra.mxu0 %v190
  %192 = vmatprep.subr.mxu0 0.0
  %v193 = vand.u32 %v26, 4294901760
  %v194 = vsub.f32 %v26, %v193
  %v195 = vand.u32 %v194, 4294901760
  %v196 = vsub.f32 %v194, %v195
  %v197 = vand.u32 %v196, 4294901760
  %198 = vmatpush1.msra.mxu0 %v197
  %199 = vmatprep.subr.mxu0 0.0
  %v200 = vand.u32 %v27, 4294901760
  %v201 = vsub.f32 %v27, %v200
  %v202 = vand.u32 %v201, 4294901760
  %v203 = vsub.f32 %v201, %v202
  %v204 = vand.u32 %v203, 4294901760
  %205 = vmatpush1.msra.mxu0 %v204
  %206 = vmatprep.subr.mxu0 0.0
  %207 = vmatpush1.msra.mxu0 0.0
  %208 = vmatprep.subr.mxu0 0.0
  %209 = vmatpush1.msra.mxu0 0.0
  %210 = vmatprep.subr.mxu0 0.0
  %211 = vmatpush1.msra.mxu0 0.0
  %212 = vmatprep.subr.mxu0 0.0
  %213 = vmatpush1.msra.mxu0 0.0
  %214 = vmatprep.subr.mxu0 0.0
  %215 = vmatpush1.msra.mxu0 0.0
  %216 = vmatprep.subr.mxu0 0.0
  %217 = vmatpush1.msra.mxu0 0.0
  %218 = vmatprep.subr.mxu0 0.0
  %219 = vmatpush1.msra.mxu0 0.0
  %220 = vmatprep.subr.mxu0 0.0
  %221 = vmatpush1.msra.mxu0 0.0
  %222 = vmatprep.subr.mxu0 0.0
  %223 = vmatpush1.msra.mxu0 0.0
  %224 = vmatprep.subr.mxu0 0.0
  %225 = vmatpush1.msra.mxu0 0.0
  %226 = vmatprep.subr.mxu0 0.0
  %227 = vmatpush1.msra.mxu0 0.0
  %228 = vmatprep.subr.mxu0 0.0
  %229 = vmatpush1.msra.mxu0 0.0
  %230 = vmatprep.subr.mxu0 0.0
  %231 = vmatpush1.msra.mxu0 0.0
  %232 = vmatprep.subr.mxu0 0.0
  %233 = vmatpush1.msra.mxu0 0.0
  %234 = vmatprep.subr.mxu0 0.0
  %235 = vmatpush1.msra.mxu0 0.0
  %236 = vmatprep.subr.mxu0 0.0
  %237 = vmatpush1.msra.mxu0 0.0
  %238 = vmatprep.subr.mxu0 0.0
  %239 = vmatpush1.msra.mxu0 0.0
  %240 = vmatprep.subr.mxu0 0.0
  %241 = vmatpush1.msra.mxu0 0.0
  %242 = vmatprep.subr.mxu0 0.0
  %243 = vmatpush1.msra.mxu0 0.0
  %244 = vmatprep.subr.mxu0 0.0
  %245 = vmatpush1.msra.mxu0 0.0
  %246 = vmatprep.subr.mxu0 0.0
  %247 = vmatpush1.msra.mxu0 0.0
  %248 = vmatprep.subr.mxu0 0.0
  %249 = vmatpush1.msra.mxu0 0.0
  %250 = vmatprep.subr.mxu0 0.0
  %251 = vmatpush1.msra.mxu0 0.0
  %252 = vmatprep.subr.mxu0 0.0
  %253 = vmatpush1.msra.mxu0 0.0
  %254 = vmatprep.subr.mxu0 0.0
  %255 = vmatpush1.msra.mxu0 0.0
  %256 = vmatprep.subr.mxu0 0.0
  %257 = vmatpush1.msra.mxu0 0.0
  %258 = vmatprep.subr.mxu0 0.0
  %259 = vmatpush1.msra.mxu0 0.0
  %260 = vmatprep.subr.mxu0 0.0
  %261 = vmatpush1.msra.mxu0 0.0
  %262 = vmatprep.mubr.f32.mxu0 0.0
  %v263 = vand.u32 %v58, 4294901760
  %264 = vmatmul.mubr.f32.gmra.mrb[0].mxu0 %v263
  %v265 = vpop.f32.mrb[0].mxu0
  %v266 = vadd.f32 %v145, %v265
  %v267 = vpop.f32.mrb[0].mxu0
  %268 = vmatprep.mubr.f32.mxu0 0.0
  %v269 = vand.u32 %v61, 4294901760
  %270 = vmatmul.mubr.f32.gmra.mrb[0].mxu0 %v269
  %v271 = vpop.f32.mrb[0].mxu0
  %v272 = vadd.f32 %v155, %v271
  %v273 = vpop.f32.mrb[0].mxu0
  %274 = vmatprep.mubr.f32.mxu0 0.0
  %v275 = vand.u32 %v64, 4294901760
  %276 = vmatmul.mubr.f32.gmra.mrb[0].mxu0 %v275
  %v277 = vpop.f32.mrb[0].mxu0
  %v278 = vadd.f32 %v165, %v277
  %v279 = vpop.f32.mrb[0].mxu0
  %280 = vmatprep.mubr.f32.mxu0 0.0
  %v281 = vand.u32 %v67, 4294901760
  %282 = vmatmul.mubr.f32.gmra.mrb[0].mxu0 %v281
  %v283 = vpop.f32.mrb[0].mxu0
  %v284 = vadd.f32 %v175, %v283
  %v285 = vpop.f32.mrb[0].mxu0
  %286 = vdwg.mxu0
  %287 = vmatprep.subr.mxu0 0.0
  %v288 = vand.u32 %v24, 4294901760
  %v289 = vsub.f32 %v24, %v288
  %290 = vmatpush1.msra.mxu0 %v289
  %291 = vmatprep.subr.mxu0 0.0
  %v292 = vand.u32 %v25, 4294901760
  %v293 = vsub.f32 %v25, %v292
  %294 = vmatpush1.msra.mxu0 %v293
  %295 = vmatprep.subr.mxu0 0.0
  %v296 = vand.u32 %v26, 4294901760
  %v297 = vsub.f32 %v26, %v296
  %298 = vmatpush1.msra.mxu0 %v297
  %299 = vmatprep.subr.mxu0 0.0
  %v300 = vand.u32 %v27, 4294901760
  %v301 = vsub.f32 %v27, %v300
  %302 = vmatpush1.msra.mxu0 %v301
  %303 = vmatprep.subr.mxu0 0.0
  %304 = vmatpush1.msra.mxu0 0.0
  %305 = vmatprep.subr.mxu0 0.0
  %306 = vmatpush1.msra.mxu0 0.0
  %307 = vmatprep.subr.mxu0 0.0
  %308 = vmatpush1.msra.mxu0 0.0
  %309 = vmatprep.subr.mxu0 0.0
  %310 = vmatpush1.msra.mxu0 0.0
  %311 = vmatprep.subr.mxu0 0.0
  %312 = vmatpush1.msra.mxu0 0.0
  %313 = vmatprep.subr.mxu0 0.0
  %314 = vmatpush1.msra.mxu0 0.0
  %315 = vmatprep.subr.mxu0 0.0
  %316 = vmatpush1.msra.mxu0 0.0
  %317 = vmatprep.subr.mxu0 0.0
  %318 = vmatpush1.msra.mxu0 0.0
  %319 = vmatprep.subr.mxu0 0.0
  %320 = vmatpush1.msra.mxu0 0.0
  %321 = vmatprep.subr.mxu0 0.0
  %322 = vmatpush1.msra.mxu0 0.0
  %323 = vmatprep.subr.mxu0 0.0
  %324 = vmatpush1.msra.mxu0 0.0
  %325 = vmatprep.subr.mxu0 0.0
  %326 = vmatpush1.msra.mxu0 0.0
  %327 = vmatprep.subr.mxu0 0.0
  %328 = vmatpush1.msra.mxu0 0.0
  %329 = vmatprep.subr.mxu0 0.0
  %330 = vmatpush1.msra.mxu0 0.0
  %331 = vmatprep.subr.mxu0 0.0
  %332 = vmatpush1.msra.mxu0 0.0
  %333 = vmatprep.subr.mxu0 0.0
  %334 = vmatpush1.msra.mxu0 0.0
  %335 = vmatprep.subr.mxu0 0.0
  %336 = vmatpush1.msra.mxu0 0.0
  %337 = vmatprep.subr.mxu0 0.0
  %338 = vmatpush1.msra.mxu0 0.0
  %339 = vmatprep.subr.mxu0 0.0
  %340 = vmatpush1.msra.mxu0 0.0
  %341 = vmatprep.subr.mxu0 0.0
  %342 = vmatpush1.msra.mxu0 0.0
  %343 = vmatprep.subr.mxu0 0.0
  %344 = vmatpush1.msra.mxu0 0.0
  %345 = vmatprep.subr.mxu0 0.0
  %346 = vmatpush1.msra.mxu0 0.0
  %347 = vmatprep.subr.mxu0 0.0
  %348 = vmatpush1.msra.mxu0 0.0
  %349 = vmatprep.subr.mxu0 0.0
  %350 = vmatpush1.msra.mxu0 0.0
  %351 = vmatprep.subr.mxu0 0.0
  %352 = vmatpush1.msra.mxu0 0.0
  %353 = vmatprep.subr.mxu0 0.0
  %354 = vmatpush1.msra.mxu0 0.0
  %355 = vmatprep.subr.mxu0 0.0
  %356 = vmatpush1.msra.mxu0 0.0
  %357 = vmatprep.subr.mxu0 0.0
  %358 = vmatpush1.msra.mxu0 0.0
  %359 = vmatprep.mubr.f32.mxu0 0.0
  %v360 = vand.u32 %v58, 4294901760
  %v361 = vsub.f32 %v58, %v360
  %362 = vmatmul.mubr.f32.gmra.mrb[0].mxu0 %v361
  %v363 = vpop.f32.mrb[0].mxu0
  %v364 = vadd.f32 %v266, %v363
  %v365 = vpop.f32.mrb[0].mxu0
  %366 = vmatprep.mubr.f32.mxu0 0.0
  %v367 = vand.u32 %v61, 4294901760
  %v368 = vsub.f32 %v61, %v367
  %369 = vmatmul.mubr.f32.gmra.mrb[0].mxu0 %v368
  %v370 = vpop.f32.mrb[0].mxu0
  %v371 = vadd.f32 %v272, %v370
  %v372 = vpop.f32.mrb[0].mxu0
  %373 = vmatprep.mubr.f32.mxu0 0.0
  %v374 = vand.u32 %v64, 4294901760
  %v375 = vsub.f32 %v64, %v374
  %376 = vmatmul.mubr.f32.gmra.mrb[0].mxu0 %v375
  %v377 = vpop.f32.mrb[0].mxu0
  %v378 = vadd.f32 %v278, %v377
  %v379 = vpop.f32.mrb[0].mxu0
  %380 = vmatprep.mubr.f32.mxu0 0.0
  %v381 = vand.u32 %v67, 4294901760
  %v382 = vsub.f32 %v67, %v381
  %383 = vmatmul.mubr.f32.gmra.mrb[0].mxu0 %v382
  %v384 = vpop.f32.mrb[0].mxu0
  %v385 = vadd.f32 %v284, %v384
  %v386 = vpop.f32.mrb[0].mxu0
  %387 = vdwg.mxu0
  %388 = vmatprep.subr.mxu0 0.0
  %v389 = vand.u32 %v24, 4294901760
  %390 = vmatpush1.msra.mxu0 %v389
  %391 = vmatprep.subr.mxu0 0.0
  %v392 = vand.u32 %v25, 4294901760
  %393 = vmatpush1.msra.mxu0 %v392
  %394 = vmatprep.subr.mxu0 0.0
  %v395 = vand.u32 %v26, 4294901760
  %396 = vmatpush1.msra.mxu0 %v395
  %397 = vmatprep.subr.mxu0 0.0
  %v398 = vand.u32 %v27, 4294901760
  %399 = vmatpush1.msra.mxu0 %v398
  %400 = vmatprep.subr.mxu0 0.0
  %401 = vmatpush1.msra.mxu0 0.0
  %402 = vmatprep.subr.mxu0 0.0
  %403 = vmatpush1.msra.mxu0 0.0
  %404 = vmatprep.subr.mxu0 0.0
  %405 = vmatpush1.msra.mxu0 0.0
  %406 = vmatprep.subr.mxu0 0.0
  %407 = vmatpush1.msra.mxu0 0.0
  %408 = vmatprep.subr.mxu0 0.0
  %409 = vmatpush1.msra.mxu0 0.0
  %410 = vmatprep.subr.mxu0 0.0
  %411 = vmatpush1.msra.mxu0 0.0
  %412 = vmatprep.subr.mxu0 0.0
  %413 = vmatpush1.msra.mxu0 0.0
  %414 = vmatprep.subr.mxu0 0.0
  %415 = vmatpush1.msra.mxu0 0.0
  %416 = vmatprep.subr.mxu0 0.0
  %417 = vmatpush1.msra.mxu0 0.0
  %418 = vmatprep.subr.mxu0 0.0
  %419 = vmatpush1.msra.mxu0 0.0
  %420 = vmatprep.subr.mxu0 0.0
  %421 = vmatpush1.msra.mxu0 0.0
  %422 = vmatprep.subr.mxu0 0.0
  %423 = vmatpush1.msra.mxu0 0.0
  %424 = vmatprep.subr.mxu0 0.0
  %425 = vmatpush1.msra.mxu0 0.0
  %426 = vmatprep.subr.mxu0 0.0
  %427 = vmatpush1.msra.mxu0 0.0
  %428 = vmatprep.subr.mxu0 0.0
  %429 = vmatpush1.msra.mxu0 0.0
  %430 = vmatprep.subr.mxu0 0.0
  %431 = vmatpush1.msra.mxu0 0.0
  %432 = vmatprep.subr.mxu0 0.0
  %433 = vmatpush1.msra.mxu0 0.0
  %434 = vmatprep.subr.mxu0 0.0
  %435 = vmatpush1.msra.mxu0 0.0
  %436 = vmatprep.subr.mxu0 0.0
  %437 = vmatpush1.msra.mxu0 0.0
  %438 = vmatprep.subr.mxu0 0.0
  %439 = vmatpush1.msra.mxu0 0.0
  %440 = vmatprep.subr.mxu0 0.0
  %441 = vmatpush1.msra.mxu0 0.0
  %442 = vmatprep.subr.mxu0 0.0
  %443 = vmatpush1.msra.mxu0 0.0
  %444 = vmatprep.subr.mxu0 0.0
  %445 = vmatpush1.msra.mxu0 0.0
  %446 = vmatprep.subr.mxu0 0.0
  %447 = vmatpush1.msra.mxu0 0.0
  %448 = vmatprep.subr.mxu0 0.0
  %449 = vmatpush1.msra.mxu0 0.0
  %450 = vmatprep.subr.mxu0 0.0
  %451 = vmatpush1.msra.mxu0 0.0
  %452 = vmatprep.subr.mxu0 0.0
  %453 = vmatpush1.msra.mxu0 0.0
  %454 = vmatprep.subr.mxu0 0.0
  %455 = vmatpush1.msra.mxu0 0.0
  %456 = vmatprep.mubr.f32.mxu0 0.0
  %v457 = vand.u32 %v58, 4294901760
  %v458 = vsub.f32 %v58, %v457
  %v459 = vand.u32 %v458, 4294901760
  %460 = vmatmul.mubr.f32.gmra.mrb[0].mxu0 %v459
  %v461 = vpop.f32.mrb[0].mxu0
  %v462 = vadd.f32 %v364, %v461
  %v463 = vpop.f32.mrb[0].mxu0
  %464 = vmatprep.mubr.f32.mxu0 0.0
  %v465 = vand.u32 %v61, 4294901760
  %v466 = vsub.f32 %v61, %v465
  %v467 = vand.u32 %v466, 4294901760
  %468 = vmatmul.mubr.f32.gmra.mrb[0].mxu0 %v467
  %v469 = vpop.f32.mrb[0].mxu0
  %v470 = vadd.f32 %v371, %v469
  %v471 = vpop.f32.mrb[0].mxu0
  %472 = vmatprep.mubr.f32.mxu0 0.0
  %v473 = vand.u32 %v64, 4294901760
  %v474 = vsub.f32 %v64, %v473
  %v475 = vand.u32 %v474, 4294901760
  %476 = vmatmul.mubr.f32.gmra.mrb[0].mxu0 %v475
  %v477 = vpop.f32.mrb[0].mxu0
  %v478 = vadd.f32 %v378, %v477
  %v479 = vpop.f32.mrb[0].mxu0
  %480 = vmatprep.mubr.f32.mxu0 0.0
  %v481 = vand.u32 %v67, 4294901760
  %v482 = vsub.f32 %v67, %v481
  %v483 = vand.u32 %v482, 4294901760
  %484 = vmatmul.mubr.f32.gmra.mrb[0].mxu0 %v483
  %v485 = vpop.f32.mrb[0].mxu0
  %v486 = vadd.f32 %v385, %v485
  %v487 = vpop.f32.mrb[0].mxu0
  %488 = vdwg.mxu0
  %489 = vmatprep.subr.mxu0 0.0
  %v490 = vand.u32 %v24, 4294901760
  %v491 = vsub.f32 %v24, %v490
  %v492 = vand.u32 %v491, 4294901760
  %493 = vmatpush1.msra.mxu0 %v492
  %494 = vmatprep.subr.mxu0 0.0
  %v495 = vand.u32 %v25, 4294901760
  %v496 = vsub.f32 %v25, %v495
  %v497 = vand.u32 %v496, 4294901760
  %498 = vmatpush1.msra.mxu0 %v497
  %499 = vmatprep.subr.mxu0 0.0
  %v500 = vand.u32 %v26, 4294901760
  %v501 = vsub.f32 %v26, %v500
  %v502 = vand.u32 %v501, 4294901760
  %503 = vmatpush1.msra.mxu0 %v502
  %504 = vmatprep.subr.mxu0 0.0
  %v505 = vand.u32 %v27, 4294901760
  %v506 = vsub.f32 %v27, %v505
  %v507 = vand.u32 %v506, 4294901760
  %508 = vmatpush1.msra.mxu0 %v507
  %509 = vmatprep.subr.mxu0 0.0
  %510 = vmatpush1.msra.mxu0 0.0
  %511 = vmatprep.subr.mxu0 0.0
  %512 = vmatpush1.msra.mxu0 0.0
  %513 = vmatprep.subr.mxu0 0.0
  %514 = vmatpush1.msra.mxu0 0.0
  %515 = vmatprep.subr.mxu0 0.0
  %516 = vmatpush1.msra.mxu0 0.0
  %517 = vmatprep.subr.mxu0 0.0
  %518 = vmatpush1.msra.mxu0 0.0
  %519 = vmatprep.subr.mxu0 0.0
  %520 = vmatpush1.msra.mxu0 0.0
  %521 = vmatprep.subr.mxu0 0.0
  %522 = vmatpush1.msra.mxu0 0.0
  %523 = vmatprep.subr.mxu0 0.0
  %524 = vmatpush1.msra.mxu0 0.0
  %525 = vmatprep.subr.mxu0 0.0
  %526 = vmatpush1.msra.mxu0 0.0
  %527 = vmatprep.subr.mxu0 0.0
  %528 = vmatpush1.msra.mxu0 0.0
  %529 = vmatprep.subr.mxu0 0.0
  %530 = vmatpush1.msra.mxu0 0.0
  %531 = vmatprep.subr.mxu0 0.0
  %532 = vmatpush1.msra.mxu0 0.0
  %533 = vmatprep.subr.mxu0 0.0
  %534 = vmatpush1.msra.mxu0 0.0
  %535 = vmatprep.subr.mxu0 0.0
  %536 = vmatpush1.msra.mxu0 0.0
  %537 = vmatprep.subr.mxu0 0.0
  %538 = vmatpush1.msra.mxu0 0.0
  %539 = vmatprep.subr.mxu0 0.0
  %540 = vmatpush1.msra.mxu0 0.0
  %541 = vmatprep.subr.mxu0 0.0
  %542 = vmatpush1.msra.mxu0 0.0
  %543 = vmatprep.subr.mxu0 0.0
  %544 = vmatpush1.msra.mxu0 0.0
  %545 = vmatprep.subr.mxu0 0.0
  %546 = vmatpush1.msra.mxu0 0.0
  %547 = vmatprep.subr.mxu0 0.0
  %548 = vmatpush1.msra.mxu0 0.0
  %549 = vmatprep.subr.mxu0 0.0
  %550 = vmatpush1.msra.mxu0 0.0
  %551 = vmatprep.subr.mxu0 0.0
  %552 = vmatpush1.msra.mxu0 0.0
  %553 = vmatprep.subr.mxu0 0.0
  %554 = vmatpush1.msra.mxu0 0.0
  %555 = vmatprep.subr.mxu0 0.0
  %556 = vmatpush1.msra.mxu0 0.0
  %557 = vmatprep.subr.mxu0 0.0
  %558 = vmatpush1.msra.mxu0 0.0
  %559 = vmatprep.subr.mxu0 0.0
  %560 = vmatpush1.msra.mxu0 0.0
  %561 = vmatprep.subr.mxu0 0.0
  %562 = vmatpush1.msra.mxu0 0.0
  %563 = vmatprep.subr.mxu0 0.0
  %564 = vmatpush1.msra.mxu0 0.0
  %565 = vmatprep.mubr.f32.mxu0 0.0
  %v566 = vand.u32 %v58, 4294901760
  %567 = vmatmul.mubr.f32.gmra.mrb[0].mxu0 %v566
  %v568 = vpop.f32.mrb[0].mxu0
  %v569 = vadd.f32 %v462, %v568
  %v570 = vpop.f32.mrb[0].mxu0
  %571 = vmatprep.mubr.f32.mxu0 0.0
  %v572 = vand.u32 %v61, 4294901760
  %573 = vmatmul.mubr.f32.gmra.mrb[0].mxu0 %v572
  %v574 = vpop.f32.mrb[0].mxu0
  %v575 = vadd.f32 %v470, %v574
  %v576 = vpop.f32.mrb[0].mxu0
  %577 = vmatprep.mubr.f32.mxu0 0.0
  %v578 = vand.u32 %v64, 4294901760
  %579 = vmatmul.mubr.f32.gmra.mrb[0].mxu0 %v578
  %v580 = vpop.f32.mrb[0].mxu0
  %v581 = vadd.f32 %v478, %v580
  %v582 = vpop.f32.mrb[0].mxu0
  %583 = vmatprep.mubr.f32.mxu0 0.0
  %v584 = vand.u32 %v67, 4294901760
  %585 = vmatmul.mubr.f32.gmra.mrb[0].mxu0 %v584
  %v586 = vpop.f32.mrb[0].mxu0
  %v587 = vadd.f32 %v486, %v586
  %v588 = vpop.f32.mrb[0].mxu0
  %589 = vdwg.mxu0
  %590 = vmatprep.subr.mxu0 0.0
  %v591 = vand.u32 %v24, 4294901760
  %592 = vmatpush1.msra.mxu0 %v591
  %593 = vmatprep.subr.mxu0 0.0
  %v594 = vand.u32 %v25, 4294901760
  %595 = vmatpush1.msra.mxu0 %v594
  %596 = vmatprep.subr.mxu0 0.0
  %v597 = vand.u32 %v26, 4294901760
  %598 = vmatpush1.msra.mxu0 %v597
  %599 = vmatprep.subr.mxu0 0.0
  %v600 = vand.u32 %v27, 4294901760
  %601 = vmatpush1.msra.mxu0 %v600
  %602 = vmatprep.subr.mxu0 0.0
  %603 = vmatpush1.msra.mxu0 0.0
  %604 = vmatprep.subr.mxu0 0.0
  %605 = vmatpush1.msra.mxu0 0.0
  %606 = vmatprep.subr.mxu0 0.0
  %607 = vmatpush1.msra.mxu0 0.0
  %608 = vmatprep.subr.mxu0 0.0
  %609 = vmatpush1.msra.mxu0 0.0
  %610 = vmatprep.subr.mxu0 0.0
  %611 = vmatpush1.msra.mxu0 0.0
  %612 = vmatprep.subr.mxu0 0.0
  %613 = vmatpush1.msra.mxu0 0.0
  %614 = vmatprep.subr.mxu0 0.0
  %615 = vmatpush1.msra.mxu0 0.0
  %616 = vmatprep.subr.mxu0 0.0
  %617 = vmatpush1.msra.mxu0 0.0
  %618 = vmatprep.subr.mxu0 0.0
  %619 = vmatpush1.msra.mxu0 0.0
  %620 = vmatprep.subr.mxu0 0.0
  %621 = vmatpush1.msra.mxu0 0.0
  %622 = vmatprep.subr.mxu0 0.0
  %623 = vmatpush1.msra.mxu0 0.0
  %624 = vmatprep.subr.mxu0 0.0
  %625 = vmatpush1.msra.mxu0 0.0
  %626 = vmatprep.subr.mxu0 0.0
  %627 = vmatpush1.msra.mxu0 0.0
  %628 = vmatprep.subr.mxu0 0.0
  %629 = vmatpush1.msra.mxu0 0.0
  %630 = vmatprep.subr.mxu0 0.0
  %631 = vmatpush1.msra.mxu0 0.0
  %632 = vmatprep.subr.mxu0 0.0
  %633 = vmatpush1.msra.mxu0 0.0
  %634 = vmatprep.subr.mxu0 0.0
  %635 = vmatpush1.msra.mxu0 0.0
  %636 = vmatprep.subr.mxu0 0.0
  %637 = vmatpush1.msra.mxu0 0.0
  %638 = vmatprep.subr.mxu0 0.0
  %639 = vmatpush1.msra.mxu0 0.0
  %640 = vmatprep.subr.mxu0 0.0
  %641 = vmatpush1.msra.mxu0 0.0
  %642 = vmatprep.subr.mxu0 0.0
  %643 = vmatpush1.msra.mxu0 0.0
  %644 = vmatprep.subr.mxu0 0.0
  %645 = vmatpush1.msra.mxu0 0.0
  %646 = vmatprep.subr.mxu0 0.0
  %647 = vmatpush1.msra.mxu0 0.0
  %648 = vmatprep.subr.mxu0 0.0
  %649 = vmatpush1.msra.mxu0 0.0
  %650 = vmatprep.subr.mxu0 0.0
  %651 = vmatpush1.msra.mxu0 0.0
  %652 = vmatprep.subr.mxu0 0.0
  %653 = vmatpush1.msra.mxu0 0.0
  %654 = vmatprep.subr.mxu0 0.0
  %655 = vmatpush1.msra.mxu0 0.0
  %656 = vmatprep.subr.mxu0 0.0
  %657 = vmatpush1.msra.mxu0 0.0
  %658 = vmatprep.mubr.f32.mxu0 0.0
  %v659 = vand.u32 %v58, 4294901760
  %660 = vmatmul.mubr.f32.gmra.mrb[0].mxu0 %v659
  %v661 = vpop.f32.mrb[0].mxu0
  %v662 = vadd.f32 %v569, %v661
  %v663 = vpop.f32.mrb[0].mxu0
  %664 = vmatprep.mubr.f32.mxu0 0.0
  %v665 = vand.u32 %v61, 4294901760
  %666 = vmatmul.mubr.f32.gmra.mrb[0].mxu0 %v665
  %v667 = vpop.f32.mrb[0].mxu0
  %v668 = vadd.f32 %v575, %v667
  %v669 = vpop.f32.mrb[0].mxu0
  %670 = vmatprep.mubr.f32.mxu0 0.0
  %v671 = vand.u32 %v64, 4294901760
  %672 = vmatmul.mubr.f32.gmra.mrb[0].mxu0 %v671
  %v673 = vpop.f32.mrb[0].mxu0
  %v674 = vadd.f32 %v581, %v673
  %v675 = vpop.f32.mrb[0].mxu0
  %676 = vmatprep.mubr.f32.mxu0 0.0
  %v677 = vand.u32 %v67, 4294901760
  %678 = vmatmul.mubr.f32.gmra.mrb[0].mxu0 %v677
  %v679 = vpop.f32.mrb[0].mxu0
  %v680 = vadd.f32 %v587, %v679
  %v681 = vpop.f32.mrb[0].mxu0
  %682 = vdwg.mxu0
  %683 = vmatprep.subr.mxu0 0.0
  %v684 = vand.u32 %v40, 4294901760
  %685 = vmatpush1.xpose.msra.mxu0 %v684
  %686 = vmatprep.subr.mxu0 0.0
  %v687 = vand.u32 %v41, 4294901760
  %688 = vmatpush1.xpose.msra.mxu0 %v687
  %689 = vmatprep.subr.mxu0 0.0
  %v690 = vand.u32 %v42, 4294901760
  %691 = vmatpush1.xpose.msra.mxu0 %v690
  %692 = vmatprep.subr.mxu0 0.0
  %v693 = vand.u32 %v43, 4294901760
  %694 = vmatpush1.xpose.msra.mxu0 %v693
  %695 = vmatprep.subr.mxu0 0.0
  %v696 = vand.u32 %v44, 4294901760
  %697 = vmatpush1.xpose.msra.mxu0 %v696
  %698 = vmatprep.subr.mxu0 0.0
  %v699 = vand.u32 %v45, 4294901760
  %700 = vmatpush1.xpose.msra.mxu0 %v699
  %701 = vmatprep.subr.mxu0 0.0
  %v702 = vand.u32 %v46, 4294901760
  %703 = vmatpush1.xpose.msra.mxu0 %v702
  %704 = vmatprep.subr.mxu0 0.0
  %v705 = vand.u32 %v47, 4294901760
  %706 = vmatpush1.xpose.msra.mxu0 %v705
  %707 = vmatprep.subr.mxu0 0.0
  %v708 = vand.u32 %v48, 4294901760
  %709 = vmatpush1.xpose.msra.mxu0 %v708
  %710 = vmatprep.subr.mxu0 0.0
  %v711 = vand.u32 %v49, 4294901760
  %712 = vmatpush1.xpose.msra.mxu0 %v711
  %713 = vmatprep.subr.mxu0 0.0
  %v714 = vand.u32 %v50, 4294901760
  %715 = vmatpush1.xpose.msra.mxu0 %v714
  %716 = vmatprep.subr.mxu0 0.0
  %v717 = vand.u32 %v51, 4294901760
  %718 = vmatpush1.xpose.msra.mxu0 %v717
  %719 = vmatprep.subr.mxu0 0.0
  %v720 = vand.u32 %v52, 4294901760
  %721 = vmatpush1.xpose.msra.mxu0 %v720
  %722 = vmatprep.subr.mxu0 0.0
  %v723 = vand.u32 %v53, 4294901760
  %724 = vmatpush1.xpose.msra.mxu0 %v723
  %725 = vmatprep.subr.mxu0 0.0
  %v726 = vand.u32 %v54, 4294901760
  %727 = vmatpush1.xpose.msra.mxu0 %v726
  %728 = vmatprep.subr.mxu0 0.0
  %v729 = vand.u32 %v55, 4294901760
  %730 = vmatpush1.xpose.msra.mxu0 %v729
  %731 = vmatprep.subr.mxu0 0.0
  %732 = vmatpush1.xpose.msra.mxu0 0.0
  %733 = vmatprep.subr.mxu0 0.0
  %734 = vmatpush1.xpose.msra.mxu0 0.0
  %735 = vmatprep.subr.mxu0 0.0
  %736 = vmatpush1.xpose.msra.mxu0 0.0
  %737 = vmatprep.subr.mxu0 0.0
  %738 = vmatpush1.xpose.msra.mxu0 0.0
  %739 = vmatprep.subr.mxu0 0.0
  %740 = vmatpush1.xpose.msra.mxu0 0.0
  %741 = vmatprep.subr.mxu0 0.0
  %742 = vmatpush1.xpose.msra.mxu0 0.0
  %743 = vmatprep.subr.mxu0 0.0
  %744 = vmatpush1.xpose.msra.mxu0 0.0
  %745 = vmatprep.subr.mxu0 0.0
  %746 = vmatpush1.xpose.msra.mxu0 0.0
  %747 = vmatprep.subr.mxu0 0.0
  %748 = vmatpush1.xpose.msra.mxu0 0.0
  %749 = vmatprep.subr.mxu0 0.0
  %750 = vmatpush1.xpose.msra.mxu0 0.0
  %751 = vmatprep.subr.mxu0 0.0
  %752 = vmatpush1.xpose.msra.mxu0 0.0
  %753 = vmatprep.subr.mxu0 0.0
  %754 = vmatpush1.xpose.msra.mxu0 0.0
  %755 = vmatprep.subr.mxu0 0.0
  %756 = vmatpush1.xpose.msra.mxu0 0.0
  %757 = vmatprep.subr.mxu0 0.0
  %758 = vmatpush1.xpose.msra.mxu0 0.0
  %759 = vmatprep.subr.mxu0 0.0
  %760 = vmatpush1.xpose.msra.mxu0 0.0
  %761 = vmatprep.subr.mxu0 0.0
  %762 = vmatpush1.xpose.msra.mxu0 0.0
  %763 = vmatprep.mubr.f32.mxu0 0.0
  %v764 = vand.u32 %v662, 4294901760
  %v765 = vsub.f32 %v662, %v764
  %v766 = vand.u32 %v765, 4294901760
  %v767 = vsub.f32 %v765, %v766
  %v768 = vand.u32 %v767, 4294901760
  %769 = vmatmul.mubr.f32.gmra.mrb[0].mxu0 %v768
  %v770 = vpop.f32.mrb[0].mxu0
  %v771 = vadd.f32 0.0, %v770
  %v772 = vpop.f32.mrb[0].mxu0
  %773 = vmatprep.mubr.f32.mxu0 0.0
  %v774 = vand.u32 %v668, 4294901760
  %v775 = vsub.f32 %v668, %v774
  %v776 = vand.u32 %v775, 4294901760
  %v777 = vsub.f32 %v775, %v776
  %v778 = vand.u32 %v777, 4294901760
  %779 = vmatmul.mubr.f32.gmra.mrb[0].mxu0 %v778
  %v780 = vpop.f32.mrb[0].mxu0
  %v781 = vadd.f32 0.0, %v780
  %v782 = vpop.f32.mrb[0].mxu0
  %783 = vmatprep.mubr.f32.mxu0 0.0
  %v784 = vand.u32 %v674, 4294901760
  %v785 = vsub.f32 %v674, %v784
  %v786 = vand.u32 %v785, 4294901760
  %v787 = vsub.f32 %v785, %v786
  %v788 = vand.u32 %v787, 4294901760
  %789 = vmatmul.mubr.f32.gmra.mrb[0].mxu0 %v788
  %v790 = vpop.f32.mrb[0].mxu0
  %v791 = vadd.f32 0.0, %v790
  %v792 = vpop.f32.mrb[0].mxu0
  %793 = vmatprep.mubr.f32.mxu0 0.0
  %v794 = vand.u32 %v680, 4294901760
  %v795 = vsub.f32 %v680, %v794
  %v796 = vand.u32 %v795, 4294901760
  %v797 = vsub.f32 %v795, %v796
  %v798 = vand.u32 %v797, 4294901760
  %799 = vmatmul.mubr.f32.gmra.mrb[0].mxu0 %v798
  %v800 = vpop.f32.mrb[0].mxu0
  %v801 = vadd.f32 0.0, %v800
  %v802 = vpop.f32.mrb[0].mxu0
  %803 = vdwg.mxu0
  %804 = vmatprep.subr.mxu0 0.0
  %v805 = vand.u32 %v40, 4294901760
  %v806 = vsub.f32 %v40, %v805
  %v807 = vand.u32 %v806, 4294901760
  %v808 = vsub.f32 %v806, %v807
  %v809 = vand.u32 %v808, 4294901760
  %810 = vmatpush1.xpose.msra.mxu0 %v809
  %811 = vmatprep.subr.mxu0 0.0
  %v812 = vand.u32 %v41, 4294901760
  %v813 = vsub.f32 %v41, %v812
  %v814 = vand.u32 %v813, 4294901760
  %v815 = vsub.f32 %v813, %v814
  %v816 = vand.u32 %v815, 4294901760
  %817 = vmatpush1.xpose.msra.mxu0 %v816
  %818 = vmatprep.subr.mxu0 0.0
  %v819 = vand.u32 %v42, 4294901760
  %v820 = vsub.f32 %v42, %v819
  %v821 = vand.u32 %v820, 4294901760
  %v822 = vsub.f32 %v820, %v821
  %v823 = vand.u32 %v822, 4294901760
  %824 = vmatpush1.xpose.msra.mxu0 %v823
  %825 = vmatprep.subr.mxu0 0.0
  %v826 = vand.u32 %v43, 4294901760
  %v827 = vsub.f32 %v43, %v826
  %v828 = vand.u32 %v827, 4294901760
  %v829 = vsub.f32 %v827, %v828
  %v830 = vand.u32 %v829, 4294901760
  %831 = vmatpush1.xpose.msra.mxu0 %v830
  %832 = vmatprep.subr.mxu0 0.0
  %v833 = vand.u32 %v44, 4294901760
  %v834 = vsub.f32 %v44, %v833
  %v835 = vand.u32 %v834, 4294901760
  %v836 = vsub.f32 %v834, %v835
  %v837 = vand.u32 %v836, 4294901760
  %838 = vmatpush1.xpose.msra.mxu0 %v837
  %839 = vmatprep.subr.mxu0 0.0
  %v840 = vand.u32 %v45, 4294901760
  %v841 = vsub.f32 %v45, %v840
  %v842 = vand.u32 %v841, 4294901760
  %v843 = vsub.f32 %v841, %v842
  %v844 = vand.u32 %v843, 4294901760
  %845 = vmatpush1.xpose.msra.mxu0 %v844
  %846 = vmatprep.subr.mxu0 0.0
  %v847 = vand.u32 %v46, 4294901760
  %v848 = vsub.f32 %v46, %v847
  %v849 = vand.u32 %v848, 4294901760
  %v850 = vsub.f32 %v848, %v849
  %v851 = vand.u32 %v850, 4294901760
  %852 = vmatpush1.xpose.msra.mxu0 %v851
  %853 = vmatprep.subr.mxu0 0.0
  %v854 = vand.u32 %v47, 4294901760
  %v855 = vsub.f32 %v47, %v854
  %v856 = vand.u32 %v855, 4294901760
  %v857 = vsub.f32 %v855, %v856
  %v858 = vand.u32 %v857, 4294901760
  %859 = vmatpush1.xpose.msra.mxu0 %v858
  %860 = vmatprep.subr.mxu0 0.0
  %v861 = vand.u32 %v48, 4294901760
  %v862 = vsub.f32 %v48, %v861
  %v863 = vand.u32 %v862, 4294901760
  %v864 = vsub.f32 %v862, %v863
  %v865 = vand.u32 %v864, 4294901760
  %866 = vmatpush1.xpose.msra.mxu0 %v865
  %867 = vmatprep.subr.mxu0 0.0
  %v868 = vand.u32 %v49, 4294901760
  %v869 = vsub.f32 %v49, %v868
  %v870 = vand.u32 %v869, 4294901760
  %v871 = vsub.f32 %v869, %v870
  %v872 = vand.u32 %v871, 4294901760
  %873 = vmatpush1.xpose.msra.mxu0 %v872
  %874 = vmatprep.subr.mxu0 0.0
  %v875 = vand.u32 %v50, 4294901760
  %v876 = vsub.f32 %v50, %v875
  %v877 = vand.u32 %v876, 4294901760
  %v878 = vsub.f32 %v876, %v877
  %v879 = vand.u32 %v878, 4294901760
  %880 = vmatpush1.xpose.msra.mxu0 %v879
  %881 = vmatprep.subr.mxu0 0.0
  %v882 = vand.u32 %v51, 4294901760
  %v883 = vsub.f32 %v51, %v882
  %v884 = vand.u32 %v883, 4294901760
  %v885 = vsub.f32 %v883, %v884
  %v886 = vand.u32 %v885, 4294901760
  %887 = vmatpush1.xpose.msra.mxu0 %v886
  %888 = vmatprep.subr.mxu0 0.0
  %v889 = vand.u32 %v52, 4294901760
  %v890 = vsub.f32 %v52, %v889
  %v891 = vand.u32 %v890, 4294901760
  %v892 = vsub.f32 %v890, %v891
  %v893 = vand.u32 %v892, 4294901760
  %894 = vmatpush1.xpose.msra.mxu0 %v893
  %895 = vmatprep.subr.mxu0 0.0
  %v896 = vand.u32 %v53, 4294901760
  %v897 = vsub.f32 %v53, %v896
  %v898 = vand.u32 %v897, 4294901760
  %v899 = vsub.f32 %v897, %v898
  %v900 = vand.u32 %v899, 4294901760
  %901 = vmatpush1.xpose.msra.mxu0 %v900
  %902 = vmatprep.subr.mxu0 0.0
  %v903 = vand.u32 %v54, 4294901760
  %v904 = vsub.f32 %v54, %v903
  %v905 = vand.u32 %v904, 4294901760
  %v906 = vsub.f32 %v904, %v905
  %v907 = vand.u32 %v906, 4294901760
  %908 = vmatpush1.xpose.msra.mxu0 %v907
  %909 = vmatprep.subr.mxu0 0.0
  %v910 = vand.u32 %v55, 4294901760
  %v911 = vsub.f32 %v55, %v910
  %v912 = vand.u32 %v911, 4294901760
  %v913 = vsub.f32 %v911, %v912
  %v914 = vand.u32 %v913, 4294901760
  %915 = vmatpush1.xpose.msra.mxu0 %v914
  %916 = vmatprep.subr.mxu0 0.0
  %917 = vmatpush1.xpose.msra.mxu0 0.0
  %918 = vmatprep.subr.mxu0 0.0
  %919 = vmatpush1.xpose.msra.mxu0 0.0
  %920 = vmatprep.subr.mxu0 0.0
  %921 = vmatpush1.xpose.msra.mxu0 0.0
  %922 = vmatprep.subr.mxu0 0.0
  %923 = vmatpush1.xpose.msra.mxu0 0.0
  %924 = vmatprep.subr.mxu0 0.0
  %925 = vmatpush1.xpose.msra.mxu0 0.0
  %926 = vmatprep.subr.mxu0 0.0
  %927 = vmatpush1.xpose.msra.mxu0 0.0
  %928 = vmatprep.subr.mxu0 0.0
  %929 = vmatpush1.xpose.msra.mxu0 0.0
  %930 = vmatprep.subr.mxu0 0.0
  %931 = vmatpush1.xpose.msra.mxu0 0.0
  %932 = vmatprep.subr.mxu0 0.0
  %933 = vmatpush1.xpose.msra.mxu0 0.0
  %934 = vmatprep.subr.mxu0 0.0
  %935 = vmatpush1.xpose.msra.mxu0 0.0
  %936 = vmatprep.subr.mxu0 0.0
  %937 = vmatpush1.xpose.msra.mxu0 0.0
  %938 = vmatprep.subr.mxu0 0.0
  %939 = vmatpush1.xpose.msra.mxu0 0.0
  %940 = vmatprep.subr.mxu0 0.0
  %941 = vmatpush1.xpose.msra.mxu0 0.0
  %942 = vmatprep.subr.mxu0 0.0
  %943 = vmatpush1.xpose.msra.mxu0 0.0
  %944 = vmatprep.subr.mxu0 0.0
  %945 = vmatpush1.xpose.msra.mxu0 0.0
  %946 = vmatprep.subr.mxu0 0.0
  %947 = vmatpush1.xpose.msra.mxu0 0.0
  %948 = vmatprep.mubr.f32.mxu0 0.0
  %v949 = vand.u32 %v662, 4294901760
  %950 = vmatmul.mubr.f32.gmra.mrb[0].mxu0 %v949
  %v951 = vpop.f32.mrb[0].mxu0
  %v952 = vadd.f32 %v771, %v951
  %v953 = vpop.f32.mrb[0].mxu0
  %954 = vmatprep.mubr.f32.mxu0 0.0
  %v955 = vand.u32 %v668, 4294901760
  %956 = vmatmul.mubr.f32.gmra.mrb[0].mxu0 %v955
  %v957 = vpop.f32.mrb[0].mxu0
  %v958 = vadd.f32 %v781, %v957
  %v959 = vpop.f32.mrb[0].mxu0
  %960 = vmatprep.mubr.f32.mxu0 0.0
  %v961 = vand.u32 %v674, 4294901760
  %962 = vmatmul.mubr.f32.gmra.mrb[0].mxu0 %v961
  %v963 = vpop.f32.mrb[0].mxu0
  %v964 = vadd.f32 %v791, %v963
  %v965 = vpop.f32.mrb[0].mxu0
  %966 = vmatprep.mubr.f32.mxu0 0.0
  %v967 = vand.u32 %v680, 4294901760
  %968 = vmatmul.mubr.f32.gmra.mrb[0].mxu0 %v967
  %v969 = vpop.f32.mrb[0].mxu0
  %v970 = vadd.f32 %v801, %v969
  %v971 = vpop.f32.mrb[0].mxu0
  %972 = vdwg.mxu0
  %973 = vmatprep.subr.mxu0 0.0
  %v974 = vand.u32 %v40, 4294901760
  %v975 = vsub.f32 %v40, %v974
  %976 = vmatpush1.xpose.msra.mxu0 %v975
  %977 = vmatprep.subr.mxu0 0.0
  %v978 = vand.u32 %v41, 4294901760
  %v979 = vsub.f32 %v41, %v978
  %980 = vmatpush1.xpose.msra.mxu0 %v979
  %981 = vmatprep.subr.mxu0 0.0
  %v982 = vand.u32 %v42, 4294901760
  %v983 = vsub.f32 %v42, %v982
  %984 = vmatpush1.xpose.msra.mxu0 %v983
  %985 = vmatprep.subr.mxu0 0.0
  %v986 = vand.u32 %v43, 4294901760
  %v987 = vsub.f32 %v43, %v986
  %988 = vmatpush1.xpose.msra.mxu0 %v987
  %989 = vmatprep.subr.mxu0 0.0
  %v990 = vand.u32 %v44, 4294901760
  %v991 = vsub.f32 %v44, %v990
  %992 = vmatpush1.xpose.msra.mxu0 %v991
  %993 = vmatprep.subr.mxu0 0.0
  %v994 = vand.u32 %v45, 4294901760
  %v995 = vsub.f32 %v45, %v994
  %996 = vmatpush1.xpose.msra.mxu0 %v995
  %997 = vmatprep.subr.mxu0 0.0
  %v998 = vand.u32 %v46, 4294901760
  %v999 = vsub.f32 %v46, %v998
  %1000 = vmatpush1.xpose.msra.mxu0 %v999
  %1001 = vmatprep.subr.mxu0 0.0
  %v1002 = vand.u32 %v47, 4294901760
  %v1003 = vsub.f32 %v47, %v1002
  %1004 = vmatpush1.xpose.msra.mxu0 %v1003
  %1005 = vmatprep.subr.mxu0 0.0
  %v1006 = vand.u32 %v48, 4294901760
  %v1007 = vsub.f32 %v48, %v1006
  %1008 = vmatpush1.xpose.msra.mxu0 %v1007
  %1009 = vmatprep.subr.mxu0 0.0
  %v1010 = vand.u32 %v49, 4294901760
  %v1011 = vsub.f32 %v49, %v1010
  %1012 = vmatpush1.xpose.msra.mxu0 %v1011
  %1013 = vmatprep.subr.mxu0 0.0
  %v1014 = vand.u32 %v50, 4294901760
  %v1015 = vsub.f32 %v50, %v1014
  %1016 = vmatpush1.xpose.msra.mxu0 %v1015
  %1017 = vmatprep.subr.mxu0 0.0
  %v1018 = vand.u32 %v51, 4294901760
  %v1019 = vsub.f32 %v51, %v1018
  %1020 = vmatpush1.xpose.msra.mxu0 %v1019
  %1021 = vmatprep.subr.mxu0 0.0
  %v1022 = vand.u32 %v52, 4294901760
  %v1023 = vsub.f32 %v52, %v1022
  %1024 = vmatpush1.xpose.msra.mxu0 %v1023
  %1025 = vmatprep.subr.mxu0 0.0
  %v1026 = vand.u32 %v53, 4294901760
  %v1027 = vsub.f32 %v53, %v1026
  %1028 = vmatpush1.xpose.msra.mxu0 %v1027
  %1029 = vmatprep.subr.mxu0 0.0
  %v1030 = vand.u32 %v54, 4294901760
  %v1031 = vsub.f32 %v54, %v1030
  %1032 = vmatpush1.xpose.msra.mxu0 %v1031
  %1033 = vmatprep.subr.mxu0 0.0
  %v1034 = vand.u32 %v55, 4294901760
  %v1035 = vsub.f32 %v55, %v1034
  %1036 = vmatpush1.xpose.msra.mxu0 %v1035
  %1037 = vmatprep.subr.mxu0 0.0
  %1038 = vmatpush1.xpose.msra.mxu0 0.0
  %1039 = vmatprep.subr.mxu0 0.0
  %1040 = vmatpush1.xpose.msra.mxu0 0.0
  %1041 = vmatprep.subr.mxu0 0.0
  %1042 = vmatpush1.xpose.msra.mxu0 0.0
  %1043 = vmatprep.subr.mxu0 0.0
  %1044 = vmatpush1.xpose.msra.mxu0 0.0
  %1045 = vmatprep.subr.mxu0 0.0
  %1046 = vmatpush1.xpose.msra.mxu0 0.0
  %1047 = vmatprep.subr.mxu0 0.0
  %1048 = vmatpush1.xpose.msra.mxu0 0.0
  %1049 = vmatprep.subr.mxu0 0.0
  %1050 = vmatpush1.xpose.msra.mxu0 0.0
  %1051 = vmatprep.subr.mxu0 0.0
  %1052 = vmatpush1.xpose.msra.mxu0 0.0
  %1053 = vmatprep.subr.mxu0 0.0
  %1054 = vmatpush1.xpose.msra.mxu0 0.0
  %1055 = vmatprep.subr.mxu0 0.0
  %1056 = vmatpush1.xpose.msra.mxu0 0.0
  %1057 = vmatprep.subr.mxu0 0.0
  %1058 = vmatpush1.xpose.msra.mxu0 0.0
  %1059 = vmatprep.subr.mxu0 0.0
  %1060 = vmatpush1.xpose.msra.mxu0 0.0
  %1061 = vmatprep.subr.mxu0 0.0
  %1062 = vmatpush1.xpose.msra.mxu0 0.0
  %1063 = vmatprep.subr.mxu0 0.0
  %1064 = vmatpush1.xpose.msra.mxu0 0.0
  %1065 = vmatprep.subr.mxu0 0.0
  %1066 = vmatpush1.xpose.msra.mxu0 0.0
  %1067 = vmatprep.subr.mxu0 0.0
  %1068 = vmatpush1.xpose.msra.mxu0 0.0
  %1069 = vmatprep.mubr.f32.mxu0 0.0
  %v1070 = vand.u32 %v662, 4294901760
  %v1071 = vsub.f32 %v662, %v1070
  %1072 = vmatmul.mubr.f32.gmra.mrb[0].mxu0 %v1071
  %v1073 = vpop.f32.mrb[0].mxu0
  %v1074 = vadd.f32 %v952, %v1073
  %v1075 = vpop.f32.mrb[0].mxu0
  %1076 = vmatprep.mubr.f32.mxu0 0.0
  %v1077 = vand.u32 %v668, 4294901760
  %v1078 = vsub.f32 %v668, %v1077
  %1079 = vmatmul.mubr.f32.gmra.mrb[0].mxu0 %v1078
  %v1080 = vpop.f32.mrb[0].mxu0
  %v1081 = vadd.f32 %v958, %v1080
  %v1082 = vpop.f32.mrb[0].mxu0
  %1083 = vmatprep.mubr.f32.mxu0 0.0
  %v1084 = vand.u32 %v674, 4294901760
  %v1085 = vsub.f32 %v674, %v1084
  %1086 = vmatmul.mubr.f32.gmra.mrb[0].mxu0 %v1085
  %v1087 = vpop.f32.mrb[0].mxu0
  %v1088 = vadd.f32 %v964, %v1087
  %v1089 = vpop.f32.mrb[0].mxu0
  %1090 = vmatprep.mubr.f32.mxu0 0.0
  %v1091 = vand.u32 %v680, 4294901760
  %v1092 = vsub.f32 %v680, %v1091
  %1093 = vmatmul.mubr.f32.gmra.mrb[0].mxu0 %v1092
  %v1094 = vpop.f32.mrb[0].mxu0
  %v1095 = vadd.f32 %v970, %v1094
  %v1096 = vpop.f32.mrb[0].mxu0
  %1097 = vdwg.mxu0
  %1098 = vmatprep.subr.mxu0 0.0
  %v1099 = vand.u32 %v40, 4294901760
  %1100 = vmatpush1.xpose.msra.mxu0 %v1099
  %1101 = vmatprep.subr.mxu0 0.0
  %v1102 = vand.u32 %v41, 4294901760
  %1103 = vmatpush1.xpose.msra.mxu0 %v1102
  %1104 = vmatprep.subr.mxu0 0.0
  %v1105 = vand.u32 %v42, 4294901760
  %1106 = vmatpush1.xpose.msra.mxu0 %v1105
  %1107 = vmatprep.subr.mxu0 0.0
  %v1108 = vand.u32 %v43, 4294901760
  %1109 = vmatpush1.xpose.msra.mxu0 %v1108
  %1110 = vmatprep.subr.mxu0 0.0
  %v1111 = vand.u32 %v44, 4294901760
  %1112 = vmatpush1.xpose.msra.mxu0 %v1111
  %1113 = vmatprep.subr.mxu0 0.0
  %v1114 = vand.u32 %v45, 4294901760
  %1115 = vmatpush1.xpose.msra.mxu0 %v1114
  %1116 = vmatprep.subr.mxu0 0.0
  %v1117 = vand.u32 %v46, 4294901760
  %1118 = vmatpush1.xpose.msra.mxu0 %v1117
  %1119 = vmatprep.subr.mxu0 0.0
  %v1120 = vand.u32 %v47, 4294901760
  %1121 = vmatpush1.xpose.msra.mxu0 %v1120
  %1122 = vmatprep.subr.mxu0 0.0
  %v1123 = vand.u32 %v48, 4294901760
  %1124 = vmatpush1.xpose.msra.mxu0 %v1123
  %1125 = vmatprep.subr.mxu0 0.0
  %v1126 = vand.u32 %v49, 4294901760
  %1127 = vmatpush1.xpose.msra.mxu0 %v1126
  %1128 = vmatprep.subr.mxu0 0.0
  %v1129 = vand.u32 %v50, 4294901760
  %1130 = vmatpush1.xpose.msra.mxu0 %v1129
  %1131 = vmatprep.subr.mxu0 0.0
  %v1132 = vand.u32 %v51, 4294901760
  %1133 = vmatpush1.xpose.msra.mxu0 %v1132
  %1134 = vmatprep.subr.mxu0 0.0
  %v1135 = vand.u32 %v52, 4294901760
  %1136 = vmatpush1.xpose.msra.mxu0 %v1135
  %1137 = vmatprep.subr.mxu0 0.0
  %v1138 = vand.u32 %v53, 4294901760
  %1139 = vmatpush1.xpose.msra.mxu0 %v1138
  %1140 = vmatprep.subr.mxu0 0.0
  %v1141 = vand.u32 %v54, 4294901760
  %1142 = vmatpush1.xpose.msra.mxu0 %v1141
  %1143 = vmatprep.subr.mxu0 0.0
  %v1144 = vand.u32 %v55, 4294901760
  %1145 = vmatpush1.xpose.msra.mxu0 %v1144
  %1146 = vmatprep.subr.mxu0 0.0
  %1147 = vmatpush1.xpose.msra.mxu0 0.0
  %1148 = vmatprep.subr.mxu0 0.0
  %1149 = vmatpush1.xpose.msra.mxu0 0.0
  %1150 = vmatprep.subr.mxu0 0.0
  %1151 = vmatpush1.xpose.msra.mxu0 0.0
  %1152 = vmatprep.subr.mxu0 0.0
  %1153 = vmatpush1.xpose.msra.mxu0 0.0
  %1154 = vmatprep.subr.mxu0 0.0
  %1155 = vmatpush1.xpose.msra.mxu0 0.0
  %1156 = vmatprep.subr.mxu0 0.0
  %1157 = vmatpush1.xpose.msra.mxu0 0.0
  %1158 = vmatprep.subr.mxu0 0.0
  %1159 = vmatpush1.xpose.msra.mxu0 0.0
  %1160 = vmatprep.subr.mxu0 0.0
  %1161 = vmatpush1.xpose.msra.mxu0 0.0
  %1162 = vmatprep.subr.mxu0 0.0
  %1163 = vmatpush1.xpose.msra.mxu0 0.0
  %1164 = vmatprep.subr.mxu0 0.0
  %1165 = vmatpush1.xpose.msra.mxu0 0.0
  %1166 = vmatprep.subr.mxu0 0.0
  %1167 = vmatpush1.xpose.msra.mxu0 0.0
  %1168 = vmatprep.subr.mxu0 0.0
  %1169 = vmatpush1.xpose.msra.mxu0 0.0
  %1170 = vmatprep.subr.mxu0 0.0
  %1171 = vmatpush1.xpose.msra.mxu0 0.0
  %1172 = vmatprep.subr.mxu0 0.0
  %1173 = vmatpush1.xpose.msra.mxu0 0.0
  %1174 = vmatprep.subr.mxu0 0.0
  %1175 = vmatpush1.xpose.msra.mxu0 0.0
  %1176 = vmatprep.subr.mxu0 0.0
  %1177 = vmatpush1.xpose.msra.mxu0 0.0
  %1178 = vmatprep.mubr.f32.mxu0 0.0
  %v1179 = vand.u32 %v662, 4294901760
  %v1180 = vsub.f32 %v662, %v1179
  %v1181 = vand.u32 %v1180, 4294901760
  %1182 = vmatmul.mubr.f32.gmra.mrb[0].mxu0 %v1181
  %v1183 = vpop.f32.mrb[0].mxu0
  %v1184 = vadd.f32 %v1074, %v1183
  %v1185 = vpop.f32.mrb[0].mxu0
  %1186 = vmatprep.mubr.f32.mxu0 0.0
  %v1187 = vand.u32 %v668, 4294901760
  %v1188 = vsub.f32 %v668, %v1187
  %v1189 = vand.u32 %v1188, 4294901760
  %1190 = vmatmul.mubr.f32.gmra.mrb[0].mxu0 %v1189
  %v1191 = vpop.f32.mrb[0].mxu0
  %v1192 = vadd.f32 %v1081, %v1191
  %v1193 = vpop.f32.mrb[0].mxu0
  %1194 = vmatprep.mubr.f32.mxu0 0.0
  %v1195 = vand.u32 %v674, 4294901760
  %v1196 = vsub.f32 %v674, %v1195
  %v1197 = vand.u32 %v1196, 4294901760
  %1198 = vmatmul.mubr.f32.gmra.mrb[0].mxu0 %v1197
  %v1199 = vpop.f32.mrb[0].mxu0
  %v1200 = vadd.f32 %v1088, %v1199
  %v1201 = vpop.f32.mrb[0].mxu0
  %1202 = vmatprep.mubr.f32.mxu0 0.0
  %v1203 = vand.u32 %v680, 4294901760
  %v1204 = vsub.f32 %v680, %v1203
  %v1205 = vand.u32 %v1204, 4294901760
  %1206 = vmatmul.mubr.f32.gmra.mrb[0].mxu0 %v1205
  %v1207 = vpop.f32.mrb[0].mxu0
  %v1208 = vadd.f32 %v1095, %v1207
  %v1209 = vpop.f32.mrb[0].mxu0
  %1210 = vdwg.mxu0
  %1211 = vmatprep.subr.mxu0 0.0
  %v1212 = vand.u32 %v40, 4294901760
  %v1213 = vsub.f32 %v40, %v1212
  %v1214 = vand.u32 %v1213, 4294901760
  %1215 = vmatpush1.xpose.msra.mxu0 %v1214
  %1216 = vmatprep.subr.mxu0 0.0
  %v1217 = vand.u32 %v41, 4294901760
  %v1218 = vsub.f32 %v41, %v1217
  %v1219 = vand.u32 %v1218, 4294901760
  %1220 = vmatpush1.xpose.msra.mxu0 %v1219
  %1221 = vmatprep.subr.mxu0 0.0
  %v1222 = vand.u32 %v42, 4294901760
  %v1223 = vsub.f32 %v42, %v1222
  %v1224 = vand.u32 %v1223, 4294901760
  %1225 = vmatpush1.xpose.msra.mxu0 %v1224
  %1226 = vmatprep.subr.mxu0 0.0
  %v1227 = vand.u32 %v43, 4294901760
  %v1228 = vsub.f32 %v43, %v1227
  %v1229 = vand.u32 %v1228, 4294901760
  %1230 = vmatpush1.xpose.msra.mxu0 %v1229
  %1231 = vmatprep.subr.mxu0 0.0
  %v1232 = vand.u32 %v44, 4294901760
  %v1233 = vsub.f32 %v44, %v1232
  %v1234 = vand.u32 %v1233, 4294901760
  %1235 = vmatpush1.xpose.msra.mxu0 %v1234
  %1236 = vmatprep.subr.mxu0 0.0
  %v1237 = vand.u32 %v45, 4294901760
  %v1238 = vsub.f32 %v45, %v1237
  %v1239 = vand.u32 %v1238, 4294901760
  %1240 = vmatpush1.xpose.msra.mxu0 %v1239
  %1241 = vmatprep.subr.mxu0 0.0
  %v1242 = vand.u32 %v46, 4294901760
  %v1243 = vsub.f32 %v46, %v1242
  %v1244 = vand.u32 %v1243, 4294901760
  %1245 = vmatpush1.xpose.msra.mxu0 %v1244
  %1246 = vmatprep.subr.mxu0 0.0
  %v1247 = vand.u32 %v47, 4294901760
  %v1248 = vsub.f32 %v47, %v1247
  %v1249 = vand.u32 %v1248, 4294901760
  %1250 = vmatpush1.xpose.msra.mxu0 %v1249
  %1251 = vmatprep.subr.mxu0 0.0
  %v1252 = vand.u32 %v48, 4294901760
  %v1253 = vsub.f32 %v48, %v1252
  %v1254 = vand.u32 %v1253, 4294901760
  %1255 = vmatpush1.xpose.msra.mxu0 %v1254
  %1256 = vmatprep.subr.mxu0 0.0
  %v1257 = vand.u32 %v49, 4294901760
  %v1258 = vsub.f32 %v49, %v1257
  %v1259 = vand.u32 %v1258, 4294901760
  %1260 = vmatpush1.xpose.msra.mxu0 %v1259
  %1261 = vmatprep.subr.mxu0 0.0
  %v1262 = vand.u32 %v50, 4294901760
  %v1263 = vsub.f32 %v50, %v1262
  %v1264 = vand.u32 %v1263, 4294901760
  %1265 = vmatpush1.xpose.msra.mxu0 %v1264
  %1266 = vmatprep.subr.mxu0 0.0
  %v1267 = vand.u32 %v51, 4294901760
  %v1268 = vsub.f32 %v51, %v1267
  %v1269 = vand.u32 %v1268, 4294901760
  %1270 = vmatpush1.xpose.msra.mxu0 %v1269
  %1271 = vmatprep.subr.mxu0 0.0
  %v1272 = vand.u32 %v52, 4294901760
  %v1273 = vsub.f32 %v52, %v1272
  %v1274 = vand.u32 %v1273, 4294901760
  %1275 = vmatpush1.xpose.msra.mxu0 %v1274
  %1276 = vmatprep.subr.mxu0 0.0
  %v1277 = vand.u32 %v53, 4294901760
  %v1278 = vsub.f32 %v53, %v1277
  %v1279 = vand.u32 %v1278, 4294901760
  %1280 = vmatpush1.xpose.msra.mxu0 %v1279
  %1281 = vmatprep.subr.mxu0 0.0
  %v1282 = vand.u32 %v54, 4294901760
  %v1283 = vsub.f32 %v54, %v1282
  %v1284 = vand.u32 %v1283, 4294901760
  %1285 = vmatpush1.xpose.msra.mxu0 %v1284
  %1286 = vmatprep.subr.mxu0 0.0
  %v1287 = vand.u32 %v55, 4294901760
  %v1288 = vsub.f32 %v55, %v1287
  %v1289 = vand.u32 %v1288, 4294901760
  %1290 = vmatpush1.xpose.msra.mxu0 %v1289
  %1291 = vmatprep.subr.mxu0 0.0
  %1292 = vmatpush1.xpose.msra.mxu0 0.0
  %1293 = vmatprep.subr.mxu0 0.0
  %1294 = vmatpush1.xpose.msra.mxu0 0.0
  %1295 = vmatprep.subr.mxu0 0.0
  %1296 = vmatpush1.xpose.msra.mxu0 0.0
  %1297 = vmatprep.subr.mxu0 0.0
  %1298 = vmatpush1.xpose.msra.mxu0 0.0
  %1299 = vmatprep.subr.mxu0 0.0
  %1300 = vmatpush1.xpose.msra.mxu0 0.0
  %1301 = vmatprep.subr.mxu0 0.0
  %1302 = vmatpush1.xpose.msra.mxu0 0.0
  %1303 = vmatprep.subr.mxu0 0.0
  %1304 = vmatpush1.xpose.msra.mxu0 0.0
  %1305 = vmatprep.subr.mxu0 0.0
  %1306 = vmatpush1.xpose.msra.mxu0 0.0
  %1307 = vmatprep.subr.mxu0 0.0
  %1308 = vmatpush1.xpose.msra.mxu0 0.0
  %1309 = vmatprep.subr.mxu0 0.0
  %1310 = vmatpush1.xpose.msra.mxu0 0.0
  %1311 = vmatprep.subr.mxu0 0.0
  %1312 = vmatpush1.xpose.msra.mxu0 0.0
  %1313 = vmatprep.subr.mxu0 0.0
  %1314 = vmatpush1.xpose.msra.mxu0 0.0
  %1315 = vmatprep.subr.mxu0 0.0
  %1316 = vmatpush1.xpose.msra.mxu0 0.0
  %1317 = vmatprep.subr.mxu0 0.0
  %1318 = vmatpush1.xpose.msra.mxu0 0.0
  %1319 = vmatprep.subr.mxu0 0.0
  %1320 = vmatpush1.xpose.msra.mxu0 0.0
  %1321 = vmatprep.subr.mxu0 0.0
  %1322 = vmatpush1.xpose.msra.mxu0 0.0
  %1323 = vmatprep.mubr.f32.mxu0 0.0
  %v1324 = vand.u32 %v662, 4294901760
  %1325 = vmatmul.mubr.f32.gmra.mrb[0].mxu0 %v1324
  %v1326 = vpop.f32.mrb[0].mxu0
  %v1327 = vadd.f32 %v1184, %v1326
  %v1328 = vpop.f32.mrb[0].mxu0
  %1329 = vmatprep.mubr.f32.mxu0 0.0
  %v1330 = vand.u32 %v668, 4294901760
  %1331 = vmatmul.mubr.f32.gmra.mrb[0].mxu0 %v1330
  %v1332 = vpop.f32.mrb[0].mxu0
  %v1333 = vadd.f32 %v1192, %v1332
  %v1334 = vpop.f32.mrb[0].mxu0
  %1335 = vmatprep.mubr.f32.mxu0 0.0
  %v1336 = vand.u32 %v674, 4294901760
  %1337 = vmatmul.mubr.f32.gmra.mrb[0].mxu0 %v1336
  %v1338 = vpop.f32.mrb[0].mxu0
  %v1339 = vadd.f32 %v1200, %v1338
  %v1340 = vpop.f32.mrb[0].mxu0
  %1341 = vmatprep.mubr.f32.mxu0 0.0
  %v1342 = vand.u32 %v680, 4294901760
  %1343 = vmatmul.mubr.f32.gmra.mrb[0].mxu0 %v1342
  %v1344 = vpop.f32.mrb[0].mxu0
  %v1345 = vadd.f32 %v1208, %v1344
  %v1346 = vpop.f32.mrb[0].mxu0
  %1347 = vdwg.mxu0
  %1348 = vmatprep.subr.mxu0 0.0
  %v1349 = vand.u32 %v40, 4294901760
  %1350 = vmatpush1.xpose.msra.mxu0 %v1349
  %1351 = vmatprep.subr.mxu0 0.0
  %v1352 = vand.u32 %v41, 4294901760
  %1353 = vmatpush1.xpose.msra.mxu0 %v1352
  %1354 = vmatprep.subr.mxu0 0.0
  %v1355 = vand.u32 %v42, 4294901760
  %1356 = vmatpush1.xpose.msra.mxu0 %v1355
  %1357 = vmatprep.subr.mxu0 0.0
  %v1358 = vand.u32 %v43, 4294901760
  %1359 = vmatpush1.xpose.msra.mxu0 %v1358
  %1360 = vmatprep.subr.mxu0 0.0
  %v1361 = vand.u32 %v44, 4294901760
  %1362 = vmatpush1.xpose.msra.mxu0 %v1361
  %1363 = vmatprep.subr.mxu0 0.0
  %v1364 = vand.u32 %v45, 4294901760
  %1365 = vmatpush1.xpose.msra.mxu0 %v1364
  %1366 = vmatprep.subr.mxu0 0.0
  %v1367 = vand.u32 %v46, 4294901760
  %1368 = vmatpush1.xpose.msra.mxu0 %v1367
  %1369 = vmatprep.subr.mxu0 0.0
  %v1370 = vand.u32 %v47, 4294901760
  %1371 = vmatpush1.xpose.msra.mxu0 %v1370
  %1372 = vmatprep.subr.mxu0 0.0
  %v1373 = vand.u32 %v48, 4294901760
  %1374 = vmatpush1.xpose.msra.mxu0 %v1373
  %1375 = vmatprep.subr.mxu0 0.0
  %v1376 = vand.u32 %v49, 4294901760
  %1377 = vmatpush1.xpose.msra.mxu0 %v1376
  %1378 = vmatprep.subr.mxu0 0.0
  %v1379 = vand.u32 %v50, 4294901760
  %1380 = vmatpush1.xpose.msra.mxu0 %v1379
  %1381 = vmatprep.subr.mxu0 0.0
  %v1382 = vand.u32 %v51, 4294901760
  %1383 = vmatpush1.xpose.msra.mxu0 %v1382
  %1384 = vmatprep.subr.mxu0 0.0
  %v1385 = vand.u32 %v52, 4294901760
  %1386 = vmatpush1.xpose.msra.mxu0 %v1385
  %1387 = vmatprep.subr.mxu0 0.0
  %v1388 = vand.u32 %v53, 4294901760
  %1389 = vmatpush1.xpose.msra.mxu0 %v1388
  %1390 = vmatprep.subr.mxu0 0.0
  %v1391 = vand.u32 %v54, 4294901760
  %1392 = vmatpush1.xpose.msra.mxu0 %v1391
  %1393 = vmatprep.subr.mxu0 0.0
  %v1394 = vand.u32 %v55, 4294901760
  %1395 = vmatpush1.xpose.msra.mxu0 %v1394
  %1396 = vmatprep.subr.mxu0 0.0
  %1397 = vmatpush1.xpose.msra.mxu0 0.0
  %1398 = vmatprep.subr.mxu0 0.0
  %1399 = vmatpush1.xpose.msra.mxu0 0.0
  %1400 = vmatprep.subr.mxu0 0.0
  %1401 = vmatpush1.xpose.msra.mxu0 0.0
  %1402 = vmatprep.subr.mxu0 0.0
  %1403 = vmatpush1.xpose.msra.mxu0 0.0
  %1404 = vmatprep.subr.mxu0 0.0
  %1405 = vmatpush1.xpose.msra.mxu0 0.0
  %1406 = vmatprep.subr.mxu0 0.0
  %1407 = vmatpush1.xpose.msra.mxu0 0.0
  %1408 = vmatprep.subr.mxu0 0.0
  %1409 = vmatpush1.xpose.msra.mxu0 0.0
  %1410 = vmatprep.subr.mxu0 0.0
  %1411 = vmatpush1.xpose.msra.mxu0 0.0
  %1412 = vmatprep.subr.mxu0 0.0
  %1413 = vmatpush1.xpose.msra.mxu0 0.0
  %1414 = vmatprep.subr.mxu0 0.0
  %1415 = vmatpush1.xpose.msra.mxu0 0.0
  %1416 = vmatprep.subr.mxu0 0.0
  %1417 = vmatpush1.xpose.msra.mxu0 0.0
  %1418 = vmatprep.subr.mxu0 0.0
  %1419 = vmatpush1.xpose.msra.mxu0 0.0
  %1420 = vmatprep.subr.mxu0 0.0
  %1421 = vmatpush1.xpose.msra.mxu0 0.0
  %1422 = vmatprep.subr.mxu0 0.0
  %1423 = vmatpush1.xpose.msra.mxu0 0.0
  %1424 = vmatprep.subr.mxu0 0.0
  %1425 = vmatpush1.xpose.msra.mxu0 0.0
  %1426 = vmatprep.subr.mxu0 0.0
  %1427 = vmatpush1.xpose.msra.mxu0 0.0
  %1428 = vmatprep.mubr.f32.mxu0 0.0
  %v1429 = vand.u32 %v662, 4294901760
  %1430 = vmatmul.mubr.f32.gmra.mrb[0].mxu0 %v1429
  %v1431 = vpop.f32.mrb[0].mxu0
  %v1432 = vadd.f32 %v1327, %v1431
  %v1433 = vpop.f32.mrb[0].mxu0
  %1434 = vmatprep.mubr.f32.mxu0 0.0
  %v1435 = vand.u32 %v668, 4294901760
  %1436 = vmatmul.mubr.f32.gmra.mrb[0].mxu0 %v1435
  %v1437 = vpop.f32.mrb[0].mxu0
  %v1438 = vadd.f32 %v1333, %v1437
  %v1439 = vpop.f32.mrb[0].mxu0
  %1440 = vmatprep.mubr.f32.mxu0 0.0
  %v1441 = vand.u32 %v674, 4294901760
  %1442 = vmatmul.mubr.f32.gmra.mrb[0].mxu0 %v1441
  %v1443 = vpop.f32.mrb[0].mxu0
  %v1444 = vadd.f32 %v1339, %v1443
  %v1445 = vpop.f32.mrb[0].mxu0
  %1446 = vmatprep.mubr.f32.mxu0 0.0
  %v1447 = vand.u32 %v680, 4294901760
  %1448 = vmatmul.mubr.f32.gmra.mrb[0].mxu0 %v1447
  %v1449 = vpop.f32.mrb[0].mxu0
  %v1450 = vadd.f32 %v1345, %v1449
  %v1451 = vpop.f32.mrb[0].mxu0
  %1452 = vdwg.mxu0
  %v1453 = vmul.f32 %v1432, %v32
  %v1454 = vmul.f32 %v1438, %v33
  %v1455 = vmul.f32 %v1444, %v34
  %v1456 = vmul.f32 %v1450, %v35
  %v1457 = vadd.f32 %v1453, 1e-06
  %v1458 = vadd.f32 %v1454, 1e-06
  %v1459 = vadd.f32 %v1455, 1e-06
  %v1460 = vadd.f32 %v1456, 1e-06
  %v1461 = vround.ne.pseudo %v1457
  %v1462 = vround.ne.pseudo %v1458
  %v1463 = vround.ne.pseudo %v1459
  %v1464 = vround.ne.pseudo %v1460
  %v1465 = vmul.f32 %v28, %v1461
  %v1466 = vmul.f32 %v29, %v1462
  %v1467 = vmul.f32 %v30, %v1463
  %v1468 = vmul.f32 %v31, %v1464
  %1469 = vmatprep.subr.mxu0 0.0
  %v1470 = vand.u32 %v40, 4294901760
  %1471 = vmatpush1.msra.mxu0 %v1470
  %1472 = vmatprep.subr.mxu0 0.0
  %v1473 = vand.u32 %v41, 4294901760
  %1474 = vmatpush1.msra.mxu0 %v1473
  %1475 = vmatprep.subr.mxu0 0.0
  %v1476 = vand.u32 %v42, 4294901760
  %1477 = vmatpush1.msra.mxu0 %v1476
  %1478 = vmatprep.subr.mxu0 0.0
  %v1479 = vand.u32 %v43, 4294901760
  %1480 = vmatpush1.msra.mxu0 %v1479
  %1481 = vmatprep.subr.mxu0 0.0
  %v1482 = vand.u32 %v44, 4294901760
  %1483 = vmatpush1.msra.mxu0 %v1482
  %1484 = vmatprep.subr.mxu0 0.0
  %v1485 = vand.u32 %v45, 4294901760
  %1486 = vmatpush1.msra.mxu0 %v1485
  %1487 = vmatprep.subr.mxu0 0.0
  %v1488 = vand.u32 %v46, 4294901760
  %1489 = vmatpush1.msra.mxu0 %v1488
  %1490 = vmatprep.subr.mxu0 0.0
  %v1491 = vand.u32 %v47, 4294901760
  %1492 = vmatpush1.msra.mxu0 %v1491
  %1493 = vmatprep.subr.mxu0 0.0
  %v1494 = vand.u32 %v48, 4294901760
  %1495 = vmatpush1.msra.mxu0 %v1494
  %1496 = vmatprep.subr.mxu0 0.0
  %v1497 = vand.u32 %v49, 4294901760
  %1498 = vmatpush1.msra.mxu0 %v1497
  %1499 = vmatprep.subr.mxu0 0.0
  %v1500 = vand.u32 %v50, 4294901760
  %1501 = vmatpush1.msra.mxu0 %v1500
  %1502 = vmatprep.subr.mxu0 0.0
  %v1503 = vand.u32 %v51, 4294901760
  %1504 = vmatpush1.msra.mxu0 %v1503
  %1505 = vmatprep.subr.mxu0 0.0
  %v1506 = vand.u32 %v52, 4294901760
  %1507 = vmatpush1.msra.mxu0 %v1506
  %1508 = vmatprep.subr.mxu0 0.0
  %v1509 = vand.u32 %v53, 4294901760
  %1510 = vmatpush1.msra.mxu0 %v1509
  %1511 = vmatprep.subr.mxu0 0.0
  %v1512 = vand.u32 %v54, 4294901760
  %1513 = vmatpush1.msra.mxu0 %v1512
  %1514 = vmatprep.subr.mxu0 0.0
  %v1515 = vand.u32 %v55, 4294901760
  %1516 = vmatpush1.msra.mxu0 %v1515
  %1517 = vmatprep.subr.mxu0 0.0
  %1518 = vmatpush1.msra.mxu0 0.0
  %1519 = vmatprep.subr.mxu0 0.0
  %1520 = vmatpush1.msra.mxu0 0.0
  %1521 = vmatprep.subr.mxu0 0.0
  %1522 = vmatpush1.msra.mxu0 0.0
  %1523 = vmatprep.subr.mxu0 0.0
  %1524 = vmatpush1.msra.mxu0 0.0
  %1525 = vmatprep.subr.mxu0 0.0
  %1526 = vmatpush1.msra.mxu0 0.0
  %1527 = vmatprep.subr.mxu0 0.0
  %1528 = vmatpush1.msra.mxu0 0.0
  %1529 = vmatprep.subr.mxu0 0.0
  %1530 = vmatpush1.msra.mxu0 0.0
  %1531 = vmatprep.subr.mxu0 0.0
  %1532 = vmatpush1.msra.mxu0 0.0
  %1533 = vmatprep.subr.mxu0 0.0
  %1534 = vmatpush1.msra.mxu0 0.0
  %1535 = vmatprep.subr.mxu0 0.0
  %1536 = vmatpush1.msra.mxu0 0.0
  %1537 = vmatprep.subr.mxu0 0.0
  %1538 = vmatpush1.msra.mxu0 0.0
  %1539 = vmatprep.subr.mxu0 0.0
  %1540 = vmatpush1.msra.mxu0 0.0
  %1541 = vmatprep.subr.mxu0 0.0
  %1542 = vmatpush1.msra.mxu0 0.0
  %1543 = vmatprep.subr.mxu0 0.0
  %1544 = vmatpush1.msra.mxu0 0.0
  %1545 = vmatprep.subr.mxu0 0.0
  %1546 = vmatpush1.msra.mxu0 0.0
  %1547 = vmatprep.subr.mxu0 0.0
  %1548 = vmatpush1.msra.mxu0 0.0
  %1549 = vmatprep.mubr.f32.mxu0 0.0
  %v1550 = vand.u32 %v1465, 4294901760
  %v1551 = vsub.f32 %v1465, %v1550
  %v1552 = vand.u32 %v1551, 4294901760
  %v1553 = vsub.f32 %v1551, %v1552
  %v1554 = vand.u32 %v1553, 4294901760
  %1555 = vmatmul.mubr.f32.gmra.mrb[0].mxu0 %v1554
  %v1556 = vpop.f32.mrb[0].mxu0
  %v1557 = vadd.f32 0.0, %v1556
  %v1558 = vpop.f32.mrb[0].mxu0
  %1559 = vmatprep.mubr.f32.mxu0 0.0
  %v1560 = vand.u32 %v1466, 4294901760
  %v1561 = vsub.f32 %v1466, %v1560
  %v1562 = vand.u32 %v1561, 4294901760
  %v1563 = vsub.f32 %v1561, %v1562
  %v1564 = vand.u32 %v1563, 4294901760
  %1565 = vmatmul.mubr.f32.gmra.mrb[0].mxu0 %v1564
  %v1566 = vpop.f32.mrb[0].mxu0
  %v1567 = vadd.f32 0.0, %v1566
  %v1568 = vpop.f32.mrb[0].mxu0
  %1569 = vmatprep.mubr.f32.mxu0 0.0
  %v1570 = vand.u32 %v1467, 4294901760
  %v1571 = vsub.f32 %v1467, %v1570
  %v1572 = vand.u32 %v1571, 4294901760
  %v1573 = vsub.f32 %v1571, %v1572
  %v1574 = vand.u32 %v1573, 4294901760
  %1575 = vmatmul.mubr.f32.gmra.mrb[0].mxu0 %v1574
  %v1576 = vpop.f32.mrb[0].mxu0
  %v1577 = vadd.f32 0.0, %v1576
  %v1578 = vpop.f32.mrb[0].mxu0
  %1579 = vmatprep.mubr.f32.mxu0 0.0
  %v1580 = vand.u32 %v1468, 4294901760
  %v1581 = vsub.f32 %v1468, %v1580
  %v1582 = vand.u32 %v1581, 4294901760
  %v1583 = vsub.f32 %v1581, %v1582
  %v1584 = vand.u32 %v1583, 4294901760
  %1585 = vmatmul.mubr.f32.gmra.mrb[0].mxu0 %v1584
  %v1586 = vpop.f32.mrb[0].mxu0
  %v1587 = vadd.f32 0.0, %v1586
  %v1588 = vpop.f32.mrb[0].mxu0
  %1589 = vdwg.mxu0
  %1590 = vmatprep.subr.mxu0 0.0
  %v1591 = vand.u32 %v40, 4294901760
  %v1592 = vsub.f32 %v40, %v1591
  %v1593 = vand.u32 %v1592, 4294901760
  %v1594 = vsub.f32 %v1592, %v1593
  %v1595 = vand.u32 %v1594, 4294901760
  %1596 = vmatpush1.msra.mxu0 %v1595
  %1597 = vmatprep.subr.mxu0 0.0
  %v1598 = vand.u32 %v41, 4294901760
  %v1599 = vsub.f32 %v41, %v1598
  %v1600 = vand.u32 %v1599, 4294901760
  %v1601 = vsub.f32 %v1599, %v1600
  %v1602 = vand.u32 %v1601, 4294901760
  %1603 = vmatpush1.msra.mxu0 %v1602
  %1604 = vmatprep.subr.mxu0 0.0
  %v1605 = vand.u32 %v42, 4294901760
  %v1606 = vsub.f32 %v42, %v1605
  %v1607 = vand.u32 %v1606, 4294901760
  %v1608 = vsub.f32 %v1606, %v1607
  %v1609 = vand.u32 %v1608, 4294901760
  %1610 = vmatpush1.msra.mxu0 %v1609
  %1611 = vmatprep.subr.mxu0 0.0
  %v1612 = vand.u32 %v43, 4294901760
  %v1613 = vsub.f32 %v43, %v1612
  %v1614 = vand.u32 %v1613, 4294901760
  %v1615 = vsub.f32 %v1613, %v1614
  %v1616 = vand.u32 %v1615, 4294901760
  %1617 = vmatpush1.msra.mxu0 %v1616
  %1618 = vmatprep.subr.mxu0 0.0
  %v1619 = vand.u32 %v44, 4294901760
  %v1620 = vsub.f32 %v44, %v1619
  %v1621 = vand.u32 %v1620, 4294901760
  %v1622 = vsub.f32 %v1620, %v1621
  %v1623 = vand.u32 %v1622, 4294901760
  %1624 = vmatpush1.msra.mxu0 %v1623
  %1625 = vmatprep.subr.mxu0 0.0
  %v1626 = vand.u32 %v45, 4294901760
  %v1627 = vsub.f32 %v45, %v1626
  %v1628 = vand.u32 %v1627, 4294901760
  %v1629 = vsub.f32 %v1627, %v1628
  %v1630 = vand.u32 %v1629, 4294901760
  %1631 = vmatpush1.msra.mxu0 %v1630
  %1632 = vmatprep.subr.mxu0 0.0
  %v1633 = vand.u32 %v46, 4294901760
  %v1634 = vsub.f32 %v46, %v1633
  %v1635 = vand.u32 %v1634, 4294901760
  %v1636 = vsub.f32 %v1634, %v1635
  %v1637 = vand.u32 %v1636, 4294901760
  %1638 = vmatpush1.msra.mxu0 %v1637
  %1639 = vmatprep.subr.mxu0 0.0
  %v1640 = vand.u32 %v47, 4294901760
  %v1641 = vsub.f32 %v47, %v1640
  %v1642 = vand.u32 %v1641, 4294901760
  %v1643 = vsub.f32 %v1641, %v1642
  %v1644 = vand.u32 %v1643, 4294901760
  %1645 = vmatpush1.msra.mxu0 %v1644
  %1646 = vmatprep.subr.mxu0 0.0
  %v1647 = vand.u32 %v48, 4294901760
  %v1648 = vsub.f32 %v48, %v1647
  %v1649 = vand.u32 %v1648, 4294901760
  %v1650 = vsub.f32 %v1648, %v1649
  %v1651 = vand.u32 %v1650, 4294901760
  %1652 = vmatpush1.msra.mxu0 %v1651
  %1653 = vmatprep.subr.mxu0 0.0
  %v1654 = vand.u32 %v49, 4294901760
  %v1655 = vsub.f32 %v49, %v1654
  %v1656 = vand.u32 %v1655, 4294901760
  %v1657 = vsub.f32 %v1655, %v1656
  %v1658 = vand.u32 %v1657, 4294901760
  %1659 = vmatpush1.msra.mxu0 %v1658
  %1660 = vmatprep.subr.mxu0 0.0
  %v1661 = vand.u32 %v50, 4294901760
  %v1662 = vsub.f32 %v50, %v1661
  %v1663 = vand.u32 %v1662, 4294901760
  %v1664 = vsub.f32 %v1662, %v1663
  %v1665 = vand.u32 %v1664, 4294901760
  %1666 = vmatpush1.msra.mxu0 %v1665
  %1667 = vmatprep.subr.mxu0 0.0
  %v1668 = vand.u32 %v51, 4294901760
  %v1669 = vsub.f32 %v51, %v1668
  %v1670 = vand.u32 %v1669, 4294901760
  %v1671 = vsub.f32 %v1669, %v1670
  %v1672 = vand.u32 %v1671, 4294901760
  %1673 = vmatpush1.msra.mxu0 %v1672
  %1674 = vmatprep.subr.mxu0 0.0
  %v1675 = vand.u32 %v52, 4294901760
  %v1676 = vsub.f32 %v52, %v1675
  %v1677 = vand.u32 %v1676, 4294901760
  %v1678 = vsub.f32 %v1676, %v1677
  %v1679 = vand.u32 %v1678, 4294901760
  %1680 = vmatpush1.msra.mxu0 %v1679
  %1681 = vmatprep.subr.mxu0 0.0
  %v1682 = vand.u32 %v53, 4294901760
  %v1683 = vsub.f32 %v53, %v1682
  %v1684 = vand.u32 %v1683, 4294901760
  %v1685 = vsub.f32 %v1683, %v1684
  %v1686 = vand.u32 %v1685, 4294901760
  %1687 = vmatpush1.msra.mxu0 %v1686
  %1688 = vmatprep.subr.mxu0 0.0
  %v1689 = vand.u32 %v54, 4294901760
  %v1690 = vsub.f32 %v54, %v1689
  %v1691 = vand.u32 %v1690, 4294901760
  %v1692 = vsub.f32 %v1690, %v1691
  %v1693 = vand.u32 %v1692, 4294901760
  %1694 = vmatpush1.msra.mxu0 %v1693
  %1695 = vmatprep.subr.mxu0 0.0
  %v1696 = vand.u32 %v55, 4294901760
  %v1697 = vsub.f32 %v55, %v1696
  %v1698 = vand.u32 %v1697, 4294901760
  %v1699 = vsub.f32 %v1697, %v1698
  %v1700 = vand.u32 %v1699, 4294901760
  %1701 = vmatpush1.msra.mxu0 %v1700
  %1702 = vmatprep.subr.mxu0 0.0
  %1703 = vmatpush1.msra.mxu0 0.0
  %1704 = vmatprep.subr.mxu0 0.0
  %1705 = vmatpush1.msra.mxu0 0.0
  %1706 = vmatprep.subr.mxu0 0.0
  %1707 = vmatpush1.msra.mxu0 0.0
  %1708 = vmatprep.subr.mxu0 0.0
  %1709 = vmatpush1.msra.mxu0 0.0
  %1710 = vmatprep.subr.mxu0 0.0
  %1711 = vmatpush1.msra.mxu0 0.0
  %1712 = vmatprep.subr.mxu0 0.0
  %1713 = vmatpush1.msra.mxu0 0.0
  %1714 = vmatprep.subr.mxu0 0.0
  %1715 = vmatpush1.msra.mxu0 0.0
  %1716 = vmatprep.subr.mxu0 0.0
  %1717 = vmatpush1.msra.mxu0 0.0
  %1718 = vmatprep.subr.mxu0 0.0
  %1719 = vmatpush1.msra.mxu0 0.0
  %1720 = vmatprep.subr.mxu0 0.0
  %1721 = vmatpush1.msra.mxu0 0.0
  %1722 = vmatprep.subr.mxu0 0.0
  %1723 = vmatpush1.msra.mxu0 0.0
  %1724 = vmatprep.subr.mxu0 0.0
  %1725 = vmatpush1.msra.mxu0 0.0
  %1726 = vmatprep.subr.mxu0 0.0
  %1727 = vmatpush1.msra.mxu0 0.0
  %1728 = vmatprep.subr.mxu0 0.0
  %1729 = vmatpush1.msra.mxu0 0.0
  %1730 = vmatprep.subr.mxu0 0.0
  %1731 = vmatpush1.msra.mxu0 0.0
  %1732 = vmatprep.subr.mxu0 0.0
  %1733 = vmatpush1.msra.mxu0 0.0
  %1734 = vmatprep.mubr.f32.mxu0 0.0
  %v1735 = vand.u32 %v1465, 4294901760
  %1736 = vmatmul.mubr.f32.gmra.mrb[0].mxu0 %v1735
  %v1737 = vpop.f32.mrb[0].mxu0
  %v1738 = vadd.f32 %v1557, %v1737
  %v1739 = vpop.f32.mrb[0].mxu0
  %1740 = vmatprep.mubr.f32.mxu0 0.0
  %v1741 = vand.u32 %v1466, 4294901760
  %1742 = vmatmul.mubr.f32.gmra.mrb[0].mxu0 %v1741
  %v1743 = vpop.f32.mrb[0].mxu0
  %v1744 = vadd.f32 %v1567, %v1743
  %v1745 = vpop.f32.mrb[0].mxu0
  %1746 = vmatprep.mubr.f32.mxu0 0.0
  %v1747 = vand.u32 %v1467, 4294901760
  %1748 = vmatmul.mubr.f32.gmra.mrb[0].mxu0 %v1747
  %v1749 = vpop.f32.mrb[0].mxu0
  %v1750 = vadd.f32 %v1577, %v1749
  %v1751 = vpop.f32.mrb[0].mxu0
  %1752 = vmatprep.mubr.f32.mxu0 0.0
  %v1753 = vand.u32 %v1468, 4294901760
  %1754 = vmatmul.mubr.f32.gmra.mrb[0].mxu0 %v1753
  %v1755 = vpop.f32.mrb[0].mxu0
  %v1756 = vadd.f32 %v1587, %v1755
  %v1757 = vpop.f32.mrb[0].mxu0
  %1758 = vdwg.mxu0
  %1759 = vmatprep.subr.mxu0 0.0
  %v1760 = vand.u32 %v40, 4294901760
  %v1761 = vsub.f32 %v40, %v1760
  %1762 = vmatpush1.msra.mxu0 %v1761
  %1763 = vmatprep.subr.mxu0 0.0
  %v1764 = vand.u32 %v41, 4294901760
  %v1765 = vsub.f32 %v41, %v1764
  %1766 = vmatpush1.msra.mxu0 %v1765
  %1767 = vmatprep.subr.mxu0 0.0
  %v1768 = vand.u32 %v42, 4294901760
  %v1769 = vsub.f32 %v42, %v1768
  %1770 = vmatpush1.msra.mxu0 %v1769
  %1771 = vmatprep.subr.mxu0 0.0
  %v1772 = vand.u32 %v43, 4294901760
  %v1773 = vsub.f32 %v43, %v1772
  %1774 = vmatpush1.msra.mxu0 %v1773
  %1775 = vmatprep.subr.mxu0 0.0
  %v1776 = vand.u32 %v44, 4294901760
  %v1777 = vsub.f32 %v44, %v1776
  %1778 = vmatpush1.msra.mxu0 %v1777
  %1779 = vmatprep.subr.mxu0 0.0
  %v1780 = vand.u32 %v45, 4294901760
  %v1781 = vsub.f32 %v45, %v1780
  %1782 = vmatpush1.msra.mxu0 %v1781
  %1783 = vmatprep.subr.mxu0 0.0
  %v1784 = vand.u32 %v46, 4294901760
  %v1785 = vsub.f32 %v46, %v1784
  %1786 = vmatpush1.msra.mxu0 %v1785
  %1787 = vmatprep.subr.mxu0 0.0
  %v1788 = vand.u32 %v47, 4294901760
  %v1789 = vsub.f32 %v47, %v1788
  %1790 = vmatpush1.msra.mxu0 %v1789
  %1791 = vmatprep.subr.mxu0 0.0
  %v1792 = vand.u32 %v48, 4294901760
  %v1793 = vsub.f32 %v48, %v1792
  %1794 = vmatpush1.msra.mxu0 %v1793
  %1795 = vmatprep.subr.mxu0 0.0
  %v1796 = vand.u32 %v49, 4294901760
  %v1797 = vsub.f32 %v49, %v1796
  %1798 = vmatpush1.msra.mxu0 %v1797
  %1799 = vmatprep.subr.mxu0 0.0
  %v1800 = vand.u32 %v50, 4294901760
  %v1801 = vsub.f32 %v50, %v1800
  %1802 = vmatpush1.msra.mxu0 %v1801
  %1803 = vmatprep.subr.mxu0 0.0
  %v1804 = vand.u32 %v51, 4294901760
  %v1805 = vsub.f32 %v51, %v1804
  %1806 = vmatpush1.msra.mxu0 %v1805
  %1807 = vmatprep.subr.mxu0 0.0
  %v1808 = vand.u32 %v52, 4294901760
  %v1809 = vsub.f32 %v52, %v1808
  %1810 = vmatpush1.msra.mxu0 %v1809
  %1811 = vmatprep.subr.mxu0 0.0
  %v1812 = vand.u32 %v53, 4294901760
  %v1813 = vsub.f32 %v53, %v1812
  %1814 = vmatpush1.msra.mxu0 %v1813
  %1815 = vmatprep.subr.mxu0 0.0
  %v1816 = vand.u32 %v54, 4294901760
  %v1817 = vsub.f32 %v54, %v1816
  %1818 = vmatpush1.msra.mxu0 %v1817
  %1819 = vmatprep.subr.mxu0 0.0
  %v1820 = vand.u32 %v55, 4294901760
  %v1821 = vsub.f32 %v55, %v1820
  %1822 = vmatpush1.msra.mxu0 %v1821
  %1823 = vmatprep.subr.mxu0 0.0
  %1824 = vmatpush1.msra.mxu0 0.0
  %1825 = vmatprep.subr.mxu0 0.0
  %1826 = vmatpush1.msra.mxu0 0.0
  %1827 = vmatprep.subr.mxu0 0.0
  %1828 = vmatpush1.msra.mxu0 0.0
  %1829 = vmatprep.subr.mxu0 0.0
  %1830 = vmatpush1.msra.mxu0 0.0
  %1831 = vmatprep.subr.mxu0 0.0
  %1832 = vmatpush1.msra.mxu0 0.0
  %1833 = vmatprep.subr.mxu0 0.0
  %1834 = vmatpush1.msra.mxu0 0.0
  %1835 = vmatprep.subr.mxu0 0.0
  %1836 = vmatpush1.msra.mxu0 0.0
  %1837 = vmatprep.subr.mxu0 0.0
  %1838 = vmatpush1.msra.mxu0 0.0
  %1839 = vmatprep.subr.mxu0 0.0
  %1840 = vmatpush1.msra.mxu0 0.0
  %1841 = vmatprep.subr.mxu0 0.0
  %1842 = vmatpush1.msra.mxu0 0.0
  %1843 = vmatprep.subr.mxu0 0.0
  %1844 = vmatpush1.msra.mxu0 0.0
  %1845 = vmatprep.subr.mxu0 0.0
  %1846 = vmatpush1.msra.mxu0 0.0
  %1847 = vmatprep.subr.mxu0 0.0
  %1848 = vmatpush1.msra.mxu0 0.0
  %1849 = vmatprep.subr.mxu0 0.0
  %1850 = vmatpush1.msra.mxu0 0.0
  %1851 = vmatprep.subr.mxu0 0.0
  %1852 = vmatpush1.msra.mxu0 0.0
  %1853 = vmatprep.subr.mxu0 0.0
  %1854 = vmatpush1.msra.mxu0 0.0
  %1855 = vmatprep.mubr.f32.mxu0 0.0
  %v1856 = vand.u32 %v1465, 4294901760
  %v1857 = vsub.f32 %v1465, %v1856
  %1858 = vmatmul.mubr.f32.gmra.mrb[0].mxu0 %v1857
  %v1859 = vpop.f32.mrb[0].mxu0
  %v1860 = vadd.f32 %v1738, %v1859
  %v1861 = vpop.f32.mrb[0].mxu0
  %1862 = vmatprep.mubr.f32.mxu0 0.0
  %v1863 = vand.u32 %v1466, 4294901760
  %v1864 = vsub.f32 %v1466, %v1863
  %1865 = vmatmul.mubr.f32.gmra.mrb[0].mxu0 %v1864
  %v1866 = vpop.f32.mrb[0].mxu0
  %v1867 = vadd.f32 %v1744, %v1866
  %v1868 = vpop.f32.mrb[0].mxu0
  %1869 = vmatprep.mubr.f32.mxu0 0.0
  %v1870 = vand.u32 %v1467, 4294901760
  %v1871 = vsub.f32 %v1467, %v1870
  %1872 = vmatmul.mubr.f32.gmra.mrb[0].mxu0 %v1871
  %v1873 = vpop.f32.mrb[0].mxu0
  %v1874 = vadd.f32 %v1750, %v1873
  %v1875 = vpop.f32.mrb[0].mxu0
  %1876 = vmatprep.mubr.f32.mxu0 0.0
  %v1877 = vand.u32 %v1468, 4294901760
  %v1878 = vsub.f32 %v1468, %v1877
  %1879 = vmatmul.mubr.f32.gmra.mrb[0].mxu0 %v1878
  %v1880 = vpop.f32.mrb[0].mxu0
  %v1881 = vadd.f32 %v1756, %v1880
  %v1882 = vpop.f32.mrb[0].mxu0
  %1883 = vdwg.mxu0
  %1884 = vmatprep.subr.mxu0 0.0
  %v1885 = vand.u32 %v40, 4294901760
  %1886 = vmatpush1.msra.mxu0 %v1885
  %1887 = vmatprep.subr.mxu0 0.0
  %v1888 = vand.u32 %v41, 4294901760
  %1889 = vmatpush1.msra.mxu0 %v1888
  %1890 = vmatprep.subr.mxu0 0.0
  %v1891 = vand.u32 %v42, 4294901760
  %1892 = vmatpush1.msra.mxu0 %v1891
  %1893 = vmatprep.subr.mxu0 0.0
  %v1894 = vand.u32 %v43, 4294901760
  %1895 = vmatpush1.msra.mxu0 %v1894
  %1896 = vmatprep.subr.mxu0 0.0
  %v1897 = vand.u32 %v44, 4294901760
  %1898 = vmatpush1.msra.mxu0 %v1897
  %1899 = vmatprep.subr.mxu0 0.0
  %v1900 = vand.u32 %v45, 4294901760
  %1901 = vmatpush1.msra.mxu0 %v1900
  %1902 = vmatprep.subr.mxu0 0.0
  %v1903 = vand.u32 %v46, 4294901760
  %1904 = vmatpush1.msra.mxu0 %v1903
  %1905 = vmatprep.subr.mxu0 0.0
  %v1906 = vand.u32 %v47, 4294901760
  %1907 = vmatpush1.msra.mxu0 %v1906
  %1908 = vmatprep.subr.mxu0 0.0
  %v1909 = vand.u32 %v48, 4294901760
  %1910 = vmatpush1.msra.mxu0 %v1909
  %1911 = vmatprep.subr.mxu0 0.0
  %v1912 = vand.u32 %v49, 4294901760
  %1913 = vmatpush1.msra.mxu0 %v1912
  %1914 = vmatprep.subr.mxu0 0.0
  %v1915 = vand.u32 %v50, 4294901760
  %1916 = vmatpush1.msra.mxu0 %v1915
  %1917 = vmatprep.subr.mxu0 0.0
  %v1918 = vand.u32 %v51, 4294901760
  %1919 = vmatpush1.msra.mxu0 %v1918
  %1920 = vmatprep.subr.mxu0 0.0
  %v1921 = vand.u32 %v52, 4294901760
  %1922 = vmatpush1.msra.mxu0 %v1921
  %1923 = vmatprep.subr.mxu0 0.0
  %v1924 = vand.u32 %v53, 4294901760
  %1925 = vmatpush1.msra.mxu0 %v1924
  %1926 = vmatprep.subr.mxu0 0.0
  %v1927 = vand.u32 %v54, 4294901760
  %1928 = vmatpush1.msra.mxu0 %v1927
  %1929 = vmatprep.subr.mxu0 0.0
  %v1930 = vand.u32 %v55, 4294901760
  %1931 = vmatpush1.msra.mxu0 %v1930
  %1932 = vmatprep.subr.mxu0 0.0
  %1933 = vmatpush1.msra.mxu0 0.0
  %1934 = vmatprep.subr.mxu0 0.0
  %1935 = vmatpush1.msra.mxu0 0.0
  %1936 = vmatprep.subr.mxu0 0.0
  %1937 = vmatpush1.msra.mxu0 0.0
  %1938 = vmatprep.subr.mxu0 0.0
  %1939 = vmatpush1.msra.mxu0 0.0
  %1940 = vmatprep.subr.mxu0 0.0
  %1941 = vmatpush1.msra.mxu0 0.0
  %1942 = vmatprep.subr.mxu0 0.0
  %1943 = vmatpush1.msra.mxu0 0.0
  %1944 = vmatprep.subr.mxu0 0.0
  %1945 = vmatpush1.msra.mxu0 0.0
  %1946 = vmatprep.subr.mxu0 0.0
  %1947 = vmatpush1.msra.mxu0 0.0
  %1948 = vmatprep.subr.mxu0 0.0
  %1949 = vmatpush1.msra.mxu0 0.0
  %1950 = vmatprep.subr.mxu0 0.0
  %1951 = vmatpush1.msra.mxu0 0.0
  %1952 = vmatprep.subr.mxu0 0.0
  %1953 = vmatpush1.msra.mxu0 0.0
  %1954 = vmatprep.subr.mxu0 0.0
  %1955 = vmatpush1.msra.mxu0 0.0
  %1956 = vmatprep.subr.mxu0 0.0
  %1957 = vmatpush1.msra.mxu0 0.0
  %1958 = vmatprep.subr.mxu0 0.0
  %1959 = vmatpush1.msra.mxu0 0.0
  %1960 = vmatprep.subr.mxu0 0.0
  %1961 = vmatpush1.msra.mxu0 0.0
  %1962 = vmatprep.subr.mxu0 0.0
  %1963 = vmatpush1.msra.mxu0 0.0
  %1964 = vmatprep.mubr.f32.mxu0 0.0
  %v1965 = vand.u32 %v1465, 4294901760
  %v1966 = vsub.f32 %v1465, %v1965
  %v1967 = vand.u32 %v1966, 4294901760
  %1968 = vmatmul.mubr.f32.gmra.mrb[0].mxu0 %v1967
  %v1969 = vpop.f32.mrb[0].mxu0
  %v1970 = vadd.f32 %v1860, %v1969
  %v1971 = vpop.f32.mrb[0].mxu0
  %1972 = vmatprep.mubr.f32.mxu0 0.0
  %v1973 = vand.u32 %v1466, 4294901760
  %v1974 = vsub.f32 %v1466, %v1973
  %v1975 = vand.u32 %v1974, 4294901760
  %1976 = vmatmul.mubr.f32.gmra.mrb[0].mxu0 %v1975
  %v1977 = vpop.f32.mrb[0].mxu0
  %v1978 = vadd.f32 %v1867, %v1977
  %v1979 = vpop.f32.mrb[0].mxu0
  %1980 = vmatprep.mubr.f32.mxu0 0.0
  %v1981 = vand.u32 %v1467, 4294901760
  %v1982 = vsub.f32 %v1467, %v1981
  %v1983 = vand.u32 %v1982, 4294901760
  %1984 = vmatmul.mubr.f32.gmra.mrb[0].mxu0 %v1983
  %v1985 = vpop.f32.mrb[0].mxu0
  %v1986 = vadd.f32 %v1874, %v1985
  %v1987 = vpop.f32.mrb[0].mxu0
  %1988 = vmatprep.mubr.f32.mxu0 0.0
  %v1989 = vand.u32 %v1468, 4294901760
  %v1990 = vsub.f32 %v1468, %v1989
  %v1991 = vand.u32 %v1990, 4294901760
  %1992 = vmatmul.mubr.f32.gmra.mrb[0].mxu0 %v1991
  %v1993 = vpop.f32.mrb[0].mxu0
  %v1994 = vadd.f32 %v1881, %v1993
  %v1995 = vpop.f32.mrb[0].mxu0
  %1996 = vdwg.mxu0
  %1997 = vmatprep.subr.mxu0 0.0
  %v1998 = vand.u32 %v40, 4294901760
  %v1999 = vsub.f32 %v40, %v1998
  %v2000 = vand.u32 %v1999, 4294901760
  %2001 = vmatpush1.msra.mxu0 %v2000
  %2002 = vmatprep.subr.mxu0 0.0
  %v2003 = vand.u32 %v41, 4294901760
  %v2004 = vsub.f32 %v41, %v2003
  %v2005 = vand.u32 %v2004, 4294901760
  %2006 = vmatpush1.msra.mxu0 %v2005
  %2007 = vmatprep.subr.mxu0 0.0
  %v2008 = vand.u32 %v42, 4294901760
  %v2009 = vsub.f32 %v42, %v2008
  %v2010 = vand.u32 %v2009, 4294901760
  %2011 = vmatpush1.msra.mxu0 %v2010
  %2012 = vmatprep.subr.mxu0 0.0
  %v2013 = vand.u32 %v43, 4294901760
  %v2014 = vsub.f32 %v43, %v2013
  %v2015 = vand.u32 %v2014, 4294901760
  %2016 = vmatpush1.msra.mxu0 %v2015
  %2017 = vmatprep.subr.mxu0 0.0
  %v2018 = vand.u32 %v44, 4294901760
  %v2019 = vsub.f32 %v44, %v2018
  %v2020 = vand.u32 %v2019, 4294901760
  %2021 = vmatpush1.msra.mxu0 %v2020
  %2022 = vmatprep.subr.mxu0 0.0
  %v2023 = vand.u32 %v45, 4294901760
  %v2024 = vsub.f32 %v45, %v2023
  %v2025 = vand.u32 %v2024, 4294901760
  %2026 = vmatpush1.msra.mxu0 %v2025
  %2027 = vmatprep.subr.mxu0 0.0
  %v2028 = vand.u32 %v46, 4294901760
  %v2029 = vsub.f32 %v46, %v2028
  %v2030 = vand.u32 %v2029, 4294901760
  %2031 = vmatpush1.msra.mxu0 %v2030
  %2032 = vmatprep.subr.mxu0 0.0
  %v2033 = vand.u32 %v47, 4294901760
  %v2034 = vsub.f32 %v47, %v2033
  %v2035 = vand.u32 %v2034, 4294901760
  %2036 = vmatpush1.msra.mxu0 %v2035
  %2037 = vmatprep.subr.mxu0 0.0
  %v2038 = vand.u32 %v48, 4294901760
  %v2039 = vsub.f32 %v48, %v2038
  %v2040 = vand.u32 %v2039, 4294901760
  %2041 = vmatpush1.msra.mxu0 %v2040
  %2042 = vmatprep.subr.mxu0 0.0
  %v2043 = vand.u32 %v49, 4294901760
  %v2044 = vsub.f32 %v49, %v2043
  %v2045 = vand.u32 %v2044, 4294901760
  %2046 = vmatpush1.msra.mxu0 %v2045
  %2047 = vmatprep.subr.mxu0 0.0
  %v2048 = vand.u32 %v50, 4294901760
  %v2049 = vsub.f32 %v50, %v2048
  %v2050 = vand.u32 %v2049, 4294901760
  %2051 = vmatpush1.msra.mxu0 %v2050
  %2052 = vmatprep.subr.mxu0 0.0
  %v2053 = vand.u32 %v51, 4294901760
  %v2054 = vsub.f32 %v51, %v2053
  %v2055 = vand.u32 %v2054, 4294901760
  %2056 = vmatpush1.msra.mxu0 %v2055
  %2057 = vmatprep.subr.mxu0 0.0
  %v2058 = vand.u32 %v52, 4294901760
  %v2059 = vsub.f32 %v52, %v2058
  %v2060 = vand.u32 %v2059, 4294901760
  %2061 = vmatpush1.msra.mxu0 %v2060
  %2062 = vmatprep.subr.mxu0 0.0
  %v2063 = vand.u32 %v53, 4294901760
  %v2064 = vsub.f32 %v53, %v2063
  %v2065 = vand.u32 %v2064, 4294901760
  %2066 = vmatpush1.msra.mxu0 %v2065
  %2067 = vmatprep.subr.mxu0 0.0
  %v2068 = vand.u32 %v54, 4294901760
  %v2069 = vsub.f32 %v54, %v2068
  %v2070 = vand.u32 %v2069, 4294901760
  %2071 = vmatpush1.msra.mxu0 %v2070
  %2072 = vmatprep.subr.mxu0 0.0
  %v2073 = vand.u32 %v55, 4294901760
  %v2074 = vsub.f32 %v55, %v2073
  %v2075 = vand.u32 %v2074, 4294901760
  %2076 = vmatpush1.msra.mxu0 %v2075
  %2077 = vmatprep.subr.mxu0 0.0
  %2078 = vmatpush1.msra.mxu0 0.0
  %2079 = vmatprep.subr.mxu0 0.0
  %2080 = vmatpush1.msra.mxu0 0.0
  %2081 = vmatprep.subr.mxu0 0.0
  %2082 = vmatpush1.msra.mxu0 0.0
  %2083 = vmatprep.subr.mxu0 0.0
  %2084 = vmatpush1.msra.mxu0 0.0
  %2085 = vmatprep.subr.mxu0 0.0
  %2086 = vmatpush1.msra.mxu0 0.0
  %2087 = vmatprep.subr.mxu0 0.0
  %2088 = vmatpush1.msra.mxu0 0.0
  %2089 = vmatprep.subr.mxu0 0.0
  %2090 = vmatpush1.msra.mxu0 0.0
  %2091 = vmatprep.subr.mxu0 0.0
  %2092 = vmatpush1.msra.mxu0 0.0
  %2093 = vmatprep.subr.mxu0 0.0
  %2094 = vmatpush1.msra.mxu0 0.0
  %2095 = vmatprep.subr.mxu0 0.0
  %2096 = vmatpush1.msra.mxu0 0.0
  %2097 = vmatprep.subr.mxu0 0.0
  %2098 = vmatpush1.msra.mxu0 0.0
  %2099 = vmatprep.subr.mxu0 0.0
  %2100 = vmatpush1.msra.mxu0 0.0
  %2101 = vmatprep.subr.mxu0 0.0
  %2102 = vmatpush1.msra.mxu0 0.0
  %2103 = vmatprep.subr.mxu0 0.0
  %2104 = vmatpush1.msra.mxu0 0.0
  %2105 = vmatprep.subr.mxu0 0.0
  %2106 = vmatpush1.msra.mxu0 0.0
  %2107 = vmatprep.subr.mxu0 0.0
  %2108 = vmatpush1.msra.mxu0 0.0
  %2109 = vmatprep.mubr.f32.mxu0 0.0
  %v2110 = vand.u32 %v1465, 4294901760
  %2111 = vmatmul.mubr.f32.gmra.mrb[0].mxu0 %v2110
  %v2112 = vpop.f32.mrb[0].mxu0
  %v2113 = vadd.f32 %v1970, %v2112
  %v2114 = vpop.f32.mrb[0].mxu0
  %2115 = vmatprep.mubr.f32.mxu0 0.0
  %v2116 = vand.u32 %v1466, 4294901760
  %2117 = vmatmul.mubr.f32.gmra.mrb[0].mxu0 %v2116
  %v2118 = vpop.f32.mrb[0].mxu0
  %v2119 = vadd.f32 %v1978, %v2118
  %v2120 = vpop.f32.mrb[0].mxu0
  %2121 = vmatprep.mubr.f32.mxu0 0.0
  %v2122 = vand.u32 %v1467, 4294901760
  %2123 = vmatmul.mubr.f32.gmra.mrb[0].mxu0 %v2122
  %v2124 = vpop.f32.mrb[0].mxu0
  %v2125 = vadd.f32 %v1986, %v2124
  %v2126 = vpop.f32.mrb[0].mxu0
  %2127 = vmatprep.mubr.f32.mxu0 0.0
  %v2128 = vand.u32 %v1468, 4294901760
  %2129 = vmatmul.mubr.f32.gmra.mrb[0].mxu0 %v2128
  %v2130 = vpop.f32.mrb[0].mxu0
  %v2131 = vadd.f32 %v1994, %v2130
  %v2132 = vpop.f32.mrb[0].mxu0
  %2133 = vdwg.mxu0
  %2134 = vmatprep.subr.mxu0 0.0
  %v2135 = vand.u32 %v40, 4294901760
  %2136 = vmatpush1.msra.mxu0 %v2135
  %2137 = vmatprep.subr.mxu0 0.0
  %v2138 = vand.u32 %v41, 4294901760
  %2139 = vmatpush1.msra.mxu0 %v2138
  %2140 = vmatprep.subr.mxu0 0.0
  %v2141 = vand.u32 %v42, 4294901760
  %2142 = vmatpush1.msra.mxu0 %v2141
  %2143 = vmatprep.subr.mxu0 0.0
  %v2144 = vand.u32 %v43, 4294901760
  %2145 = vmatpush1.msra.mxu0 %v2144
  %2146 = vmatprep.subr.mxu0 0.0
  %v2147 = vand.u32 %v44, 4294901760
  %2148 = vmatpush1.msra.mxu0 %v2147
  %2149 = vmatprep.subr.mxu0 0.0
  %v2150 = vand.u32 %v45, 4294901760
  %2151 = vmatpush1.msra.mxu0 %v2150
  %2152 = vmatprep.subr.mxu0 0.0
  %v2153 = vand.u32 %v46, 4294901760
  %2154 = vmatpush1.msra.mxu0 %v2153
  %2155 = vmatprep.subr.mxu0 0.0
  %v2156 = vand.u32 %v47, 4294901760
  %2157 = vmatpush1.msra.mxu0 %v2156
  %2158 = vmatprep.subr.mxu0 0.0
  %v2159 = vand.u32 %v48, 4294901760
  %2160 = vmatpush1.msra.mxu0 %v2159
  %2161 = vmatprep.subr.mxu0 0.0
  %v2162 = vand.u32 %v49, 4294901760
  %2163 = vmatpush1.msra.mxu0 %v2162
  %2164 = vmatprep.subr.mxu0 0.0
  %v2165 = vand.u32 %v50, 4294901760
  %2166 = vmatpush1.msra.mxu0 %v2165
  %2167 = vmatprep.subr.mxu0 0.0
  %v2168 = vand.u32 %v51, 4294901760
  %2169 = vmatpush1.msra.mxu0 %v2168
  %2170 = vmatprep.subr.mxu0 0.0
  %v2171 = vand.u32 %v52, 4294901760
  %2172 = vmatpush1.msra.mxu0 %v2171
  %2173 = vmatprep.subr.mxu0 0.0
  %v2174 = vand.u32 %v53, 4294901760
  %2175 = vmatpush1.msra.mxu0 %v2174
  %2176 = vmatprep.subr.mxu0 0.0
  %v2177 = vand.u32 %v54, 4294901760
  %2178 = vmatpush1.msra.mxu0 %v2177
  %2179 = vmatprep.subr.mxu0 0.0
  %v2180 = vand.u32 %v55, 4294901760
  %2181 = vmatpush1.msra.mxu0 %v2180
  %2182 = vmatprep.subr.mxu0 0.0
  %2183 = vmatpush1.msra.mxu0 0.0
  %2184 = vmatprep.subr.mxu0 0.0
  %2185 = vmatpush1.msra.mxu0 0.0
  %2186 = vmatprep.subr.mxu0 0.0
  %2187 = vmatpush1.msra.mxu0 0.0
  %2188 = vmatprep.subr.mxu0 0.0
  %2189 = vmatpush1.msra.mxu0 0.0
  %2190 = vmatprep.subr.mxu0 0.0
  %2191 = vmatpush1.msra.mxu0 0.0
  %2192 = vmatprep.subr.mxu0 0.0
  %2193 = vmatpush1.msra.mxu0 0.0
  %2194 = vmatprep.subr.mxu0 0.0
  %2195 = vmatpush1.msra.mxu0 0.0
  %2196 = vmatprep.subr.mxu0 0.0
  %2197 = vmatpush1.msra.mxu0 0.0
  %2198 = vmatprep.subr.mxu0 0.0
  %2199 = vmatpush1.msra.mxu0 0.0
  %2200 = vmatprep.subr.mxu0 0.0
  %2201 = vmatpush1.msra.mxu0 0.0
  %2202 = vmatprep.subr.mxu0 0.0
  %2203 = vmatpush1.msra.mxu0 0.0
  %2204 = vmatprep.subr.mxu0 0.0
  %2205 = vmatpush1.msra.mxu0 0.0
  %2206 = vmatprep.subr.mxu0 0.0
  %2207 = vmatpush1.msra.mxu0 0.0
  %2208 = vmatprep.subr.mxu0 0.0
  %2209 = vmatpush1.msra.mxu0 0.0
  %2210 = vmatprep.subr.mxu0 0.0
  %2211 = vmatpush1.msra.mxu0 0.0
  %2212 = vmatprep.subr.mxu0 0.0
  %2213 = vmatpush1.msra.mxu0 0.0
  %2214 = vmatprep.mubr.f32.mxu0 0.0
  %v2215 = vand.u32 %v1465, 4294901760
  %2216 = vmatmul.mubr.f32.gmra.mrb[0].mxu0 %v2215
  %v2217 = vpop.f32.mrb[0].mxu0
  %v2218 = vadd.f32 %v2113, %v2217
  %v2219 = vpop.f32.mrb[0].mxu0
  %2220 = vmatprep.mubr.f32.mxu0 0.0
  %v2221 = vand.u32 %v1466, 4294901760
  %2222 = vmatmul.mubr.f32.gmra.mrb[0].mxu0 %v2221
  %v2223 = vpop.f32.mrb[0].mxu0
  %v2224 = vadd.f32 %v2119, %v2223
  %v2225 = vpop.f32.mrb[0].mxu0
  %2226 = vmatprep.mubr.f32.mxu0 0.0
  %v2227 = vand.u32 %v1467, 4294901760
  %2228 = vmatmul.mubr.f32.gmra.mrb[0].mxu0 %v2227
  %v2229 = vpop.f32.mrb[0].mxu0
  %v2230 = vadd.f32 %v2125, %v2229
  %v2231 = vpop.f32.mrb[0].mxu0
  %2232 = vmatprep.mubr.f32.mxu0 0.0
  %v2233 = vand.u32 %v1468, 4294901760
  %2234 = vmatmul.mubr.f32.gmra.mrb[0].mxu0 %v2233
  %v2235 = vpop.f32.mrb[0].mxu0
  %v2236 = vadd.f32 %v2131, %v2235
  %v2237 = vpop.f32.mrb[0].mxu0
  %2238 = vdwg.mxu0
  %2239 = vxpose.xlu0.b32.start [1/16] %v36, 128
  %2240 = vxpose.xlu0.b32.cont [2/16] %v37, 128
  %2241 = vxpose.xlu0.b32.cont [3/16] %v38, 128
  %2242 = vxpose.xlu0.b32.cont [4/16] %v39, 128
  %2243 = vxpose.xlu0.b32.cont [5/16] 0.0, 128
  %2244 = vxpose.xlu0.b32.cont [6/16] 0.0, 128
  %2245 = vxpose.xlu0.b32.cont [7/16] 0.0, 128
  %2246 = vxpose.xlu0.b32.cont [8/16] 0.0, 128
  %2247 = vxpose.xlu0.b32.cont [9/16] 0.0, 128
  %2248 = vxpose.xlu0.b32.cont [10/16] 0.0, 128
  %2249 = vxpose.xlu0.b32.cont [11/16] 0.0, 128
  %2250 = vxpose.xlu0.b32.cont [12/16] 0.0, 128
  %2251 = vxpose.xlu0.b32.cont [13/16] 0.0, 128
  %2252 = vxpose.xlu0.b32.cont [14/16] 0.0, 128
  %2253 = vxpose.xlu0.b32.cont [15/16] 0.0, 128
  %2254 = vxpose.xlu0.b32.end [16/16] 0.0, 128
  %v2255 = vpop.trf.xlu0
  %v2256 = vpop.trf.xlu0
  %v2257 = vpop.trf.xlu0
  %v2258 = vpop.trf.xlu0
  %v2259 = vpop.trf.xlu0
  %v2260 = vpop.trf.xlu0
  %v2261 = vpop.trf.xlu0
  %v2262 = vpop.trf.xlu0
  %v2263 = vpop.trf.xlu0
  %v2264 = vpop.trf.xlu0
  %v2265 = vpop.trf.xlu0
  %v2266 = vpop.trf.xlu0
  %v2267 = vpop.trf.xlu0
  %v2268 = vpop.trf.xlu0
  %v2269 = vpop.trf.xlu0
  %v2270 = vpop.trf.xlu0
  %v2272 = vsel %vm56, %v2255, 0
  %v2275 = vsel %vm56, %v2256, 0
  %v2278 = vsel %vm56, %v2257, 0
  %v2281 = vsel %vm56, %v2258, 0
  %2283 = vmatprep.subr.mxu0 0.0
  %v2284 = vand.u32 %v2218, 4294901760
  %2285 = vmatpush1.msra.mxu0 %v2284
  %2286 = vmatprep.subr.mxu0 0.0
  %v2287 = vand.u32 %v2224, 4294901760
  %2288 = vmatpush1.msra.mxu0 %v2287
  %2289 = vmatprep.subr.mxu0 0.0
  %v2290 = vand.u32 %v2230, 4294901760
  %2291 = vmatpush1.msra.mxu0 %v2290
  %2292 = vmatprep.subr.mxu0 0.0
  %v2293 = vand.u32 %v2236, 4294901760
  %2294 = vmatpush1.msra.mxu0 %v2293
  %2295 = vmatprep.subr.mxu0 0.0
  %2296 = vmatpush1.msra.mxu0 0.0
  %2297 = vmatprep.subr.mxu0 0.0
  %2298 = vmatpush1.msra.mxu0 0.0
  %2299 = vmatprep.subr.mxu0 0.0
  %2300 = vmatpush1.msra.mxu0 0.0
  %2301 = vmatprep.subr.mxu0 0.0
  %2302 = vmatpush1.msra.mxu0 0.0
  %2303 = vmatprep.subr.mxu0 0.0
  %2304 = vmatpush1.msra.mxu0 0.0
  %2305 = vmatprep.subr.mxu0 0.0
  %2306 = vmatpush1.msra.mxu0 0.0
  %2307 = vmatprep.subr.mxu0 0.0
  %2308 = vmatpush1.msra.mxu0 0.0
  %2309 = vmatprep.subr.mxu0 0.0
  %2310 = vmatpush1.msra.mxu0 0.0
  %2311 = vmatprep.subr.mxu0 0.0
  %2312 = vmatpush1.msra.mxu0 0.0
  %2313 = vmatprep.subr.mxu0 0.0
  %2314 = vmatpush1.msra.mxu0 0.0
  %2315 = vmatprep.subr.mxu0 0.0
  %2316 = vmatpush1.msra.mxu0 0.0
  %2317 = vmatprep.subr.mxu0 0.0
  %2318 = vmatpush1.msra.mxu0 0.0
  %2319 = vmatprep.subr.mxu0 0.0
  %2320 = vmatpush1.msra.mxu0 0.0
  %2321 = vmatprep.subr.mxu0 0.0
  %2322 = vmatpush1.msra.mxu0 0.0
  %2323 = vmatprep.subr.mxu0 0.0
  %2324 = vmatpush1.msra.mxu0 0.0
  %2325 = vmatprep.subr.mxu0 0.0
  %2326 = vmatpush1.msra.mxu0 0.0
  %2327 = vmatprep.subr.mxu0 0.0
  %2328 = vmatpush1.msra.mxu0 0.0
  %2329 = vmatprep.subr.mxu0 0.0
  %2330 = vmatpush1.msra.mxu0 0.0
  %2331 = vmatprep.subr.mxu0 0.0
  %2332 = vmatpush1.msra.mxu0 0.0
  %2333 = vmatprep.subr.mxu0 0.0
  %2334 = vmatpush1.msra.mxu0 0.0
  %2335 = vmatprep.subr.mxu0 0.0
  %2336 = vmatpush1.msra.mxu0 0.0
  %2337 = vmatprep.subr.mxu0 0.0
  %2338 = vmatpush1.msra.mxu0 0.0
  %2339 = vmatprep.subr.mxu0 0.0
  %2340 = vmatpush1.msra.mxu0 0.0
  %2341 = vmatprep.subr.mxu0 0.0
  %2342 = vmatpush1.msra.mxu0 0.0
  %2343 = vmatprep.subr.mxu0 0.0
  %2344 = vmatpush1.msra.mxu0 0.0
  %2345 = vmatprep.subr.mxu0 0.0
  %2346 = vmatpush1.msra.mxu0 0.0
  %2347 = vmatprep.subr.mxu0 0.0
  %2348 = vmatpush1.msra.mxu0 0.0
  %2349 = vmatprep.subr.mxu0 0.0
  %2350 = vmatpush1.msra.mxu0 0.0
  %2351 = vmatprep.mubr.f32.mxu0 0.0
  %v2352 = vand.u32 %v2272, 4294901760
  %v2353 = vsub.f32 %v2272, %v2352
  %v2354 = vand.u32 %v2353, 4294901760
  %v2355 = vsub.f32 %v2353, %v2354
  %v2356 = vand.u32 %v2355, 4294901760
  %2357 = vmatmul.mubr.f32.gmra.mrb[0].mxu0 %v2356
  %v2358 = vpop.f32.mrb[0].mxu0
  %v2359 = vadd.f32 0.0, %v2358
  %v2360 = vpop.f32.mrb[0].mxu0
  %2361 = vmatprep.mubr.f32.mxu0 0.0
  %v2362 = vand.u32 %v2275, 4294901760
  %v2363 = vsub.f32 %v2275, %v2362
  %v2364 = vand.u32 %v2363, 4294901760
  %v2365 = vsub.f32 %v2363, %v2364
  %v2366 = vand.u32 %v2365, 4294901760
  %2367 = vmatmul.mubr.f32.gmra.mrb[0].mxu0 %v2366
  %v2368 = vpop.f32.mrb[0].mxu0
  %v2369 = vadd.f32 0.0, %v2368
  %v2370 = vpop.f32.mrb[0].mxu0
  %2371 = vmatprep.mubr.f32.mxu0 0.0
  %v2372 = vand.u32 %v2278, 4294901760
  %v2373 = vsub.f32 %v2278, %v2372
  %v2374 = vand.u32 %v2373, 4294901760
  %v2375 = vsub.f32 %v2373, %v2374
  %v2376 = vand.u32 %v2375, 4294901760
  %2377 = vmatmul.mubr.f32.gmra.mrb[0].mxu0 %v2376
  %v2378 = vpop.f32.mrb[0].mxu0
  %v2379 = vadd.f32 0.0, %v2378
  %v2380 = vpop.f32.mrb[0].mxu0
  %2381 = vmatprep.mubr.f32.mxu0 0.0
  %v2382 = vand.u32 %v2281, 4294901760
  %v2383 = vsub.f32 %v2281, %v2382
  %v2384 = vand.u32 %v2383, 4294901760
  %v2385 = vsub.f32 %v2383, %v2384
  %v2386 = vand.u32 %v2385, 4294901760
  %2387 = vmatmul.mubr.f32.gmra.mrb[0].mxu0 %v2386
  %v2388 = vpop.f32.mrb[0].mxu0
  %v2389 = vadd.f32 0.0, %v2388
  %v2390 = vpop.f32.mrb[0].mxu0
  %2391 = vdwg.mxu0
  %2392 = vmatprep.subr.mxu0 0.0
  %v2393 = vand.u32 %v2218, 4294901760
  %v2394 = vsub.f32 %v2218, %v2393
  %v2395 = vand.u32 %v2394, 4294901760
  %v2396 = vsub.f32 %v2394, %v2395
  %v2397 = vand.u32 %v2396, 4294901760
  %2398 = vmatpush1.msra.mxu0 %v2397
  %2399 = vmatprep.subr.mxu0 0.0
  %v2400 = vand.u32 %v2224, 4294901760
  %v2401 = vsub.f32 %v2224, %v2400
  %v2402 = vand.u32 %v2401, 4294901760
  %v2403 = vsub.f32 %v2401, %v2402
  %v2404 = vand.u32 %v2403, 4294901760
  %2405 = vmatpush1.msra.mxu0 %v2404
  %2406 = vmatprep.subr.mxu0 0.0
  %v2407 = vand.u32 %v2230, 4294901760
  %v2408 = vsub.f32 %v2230, %v2407
  %v2409 = vand.u32 %v2408, 4294901760
  %v2410 = vsub.f32 %v2408, %v2409
  %v2411 = vand.u32 %v2410, 4294901760
  %2412 = vmatpush1.msra.mxu0 %v2411
  %2413 = vmatprep.subr.mxu0 0.0
  %v2414 = vand.u32 %v2236, 4294901760
  %v2415 = vsub.f32 %v2236, %v2414
  %v2416 = vand.u32 %v2415, 4294901760
  %v2417 = vsub.f32 %v2415, %v2416
  %v2418 = vand.u32 %v2417, 4294901760
  %2419 = vmatpush1.msra.mxu0 %v2418
  %2420 = vmatprep.subr.mxu0 0.0
  %2421 = vmatpush1.msra.mxu0 0.0
  %2422 = vmatprep.subr.mxu0 0.0
  %2423 = vmatpush1.msra.mxu0 0.0
  %2424 = vmatprep.subr.mxu0 0.0
  %2425 = vmatpush1.msra.mxu0 0.0
  %2426 = vmatprep.subr.mxu0 0.0
  %2427 = vmatpush1.msra.mxu0 0.0
  %2428 = vmatprep.subr.mxu0 0.0
  %2429 = vmatpush1.msra.mxu0 0.0
  %2430 = vmatprep.subr.mxu0 0.0
  %2431 = vmatpush1.msra.mxu0 0.0
  %2432 = vmatprep.subr.mxu0 0.0
  %2433 = vmatpush1.msra.mxu0 0.0
  %2434 = vmatprep.subr.mxu0 0.0
  %2435 = vmatpush1.msra.mxu0 0.0
  %2436 = vmatprep.subr.mxu0 0.0
  %2437 = vmatpush1.msra.mxu0 0.0
  %2438 = vmatprep.subr.mxu0 0.0
  %2439 = vmatpush1.msra.mxu0 0.0
  %2440 = vmatprep.subr.mxu0 0.0
  %2441 = vmatpush1.msra.mxu0 0.0
  %2442 = vmatprep.subr.mxu0 0.0
  %2443 = vmatpush1.msra.mxu0 0.0
  %2444 = vmatprep.subr.mxu0 0.0
  %2445 = vmatpush1.msra.mxu0 0.0
  %2446 = vmatprep.subr.mxu0 0.0
  %2447 = vmatpush1.msra.mxu0 0.0
  %2448 = vmatprep.subr.mxu0 0.0
  %2449 = vmatpush1.msra.mxu0 0.0
  %2450 = vmatprep.subr.mxu0 0.0
  %2451 = vmatpush1.msra.mxu0 0.0
  %2452 = vmatprep.subr.mxu0 0.0
  %2453 = vmatpush1.msra.mxu0 0.0
  %2454 = vmatprep.subr.mxu0 0.0
  %2455 = vmatpush1.msra.mxu0 0.0
  %2456 = vmatprep.subr.mxu0 0.0
  %2457 = vmatpush1.msra.mxu0 0.0
  %2458 = vmatprep.subr.mxu0 0.0
  %2459 = vmatpush1.msra.mxu0 0.0
  %2460 = vmatprep.subr.mxu0 0.0
  %2461 = vmatpush1.msra.mxu0 0.0
  %2462 = vmatprep.subr.mxu0 0.0
  %2463 = vmatpush1.msra.mxu0 0.0
  %2464 = vmatprep.subr.mxu0 0.0
  %2465 = vmatpush1.msra.mxu0 0.0
  %2466 = vmatprep.subr.mxu0 0.0
  %2467 = vmatpush1.msra.mxu0 0.0
  %2468 = vmatprep.subr.mxu0 0.0
  %2469 = vmatpush1.msra.mxu0 0.0
  %2470 = vmatprep.subr.mxu0 0.0
  %2471 = vmatpush1.msra.mxu0 0.0
  %2472 = vmatprep.subr.mxu0 0.0
  %2473 = vmatpush1.msra.mxu0 0.0
  %2474 = vmatprep.subr.mxu0 0.0
  %2475 = vmatpush1.msra.mxu0 0.0
  %2476 = vmatprep.mubr.f32.mxu0 0.0
  %v2477 = vand.u32 %v2272, 4294901760
  %2478 = vmatmul.mubr.f32.gmra.mrb[0].mxu0 %v2477
  %v2479 = vpop.f32.mrb[0].mxu0
  %v2480 = vadd.f32 %v2359, %v2479
  %v2481 = vpop.f32.mrb[0].mxu0
  %2482 = vmatprep.mubr.f32.mxu0 0.0
  %v2483 = vand.u32 %v2275, 4294901760
  %2484 = vmatmul.mubr.f32.gmra.mrb[0].mxu0 %v2483
  %v2485 = vpop.f32.mrb[0].mxu0
  %v2486 = vadd.f32 %v2369, %v2485
  %v2487 = vpop.f32.mrb[0].mxu0
  %2488 = vmatprep.mubr.f32.mxu0 0.0
  %v2489 = vand.u32 %v2278, 4294901760
  %2490 = vmatmul.mubr.f32.gmra.mrb[0].mxu0 %v2489
  %v2491 = vpop.f32.mrb[0].mxu0
  %v2492 = vadd.f32 %v2379, %v2491
  %v2493 = vpop.f32.mrb[0].mxu0
  %2494 = vmatprep.mubr.f32.mxu0 0.0
  %v2495 = vand.u32 %v2281, 4294901760
  %2496 = vmatmul.mubr.f32.gmra.mrb[0].mxu0 %v2495
  %v2497 = vpop.f32.mrb[0].mxu0
  %v2498 = vadd.f32 %v2389, %v2497
  %v2499 = vpop.f32.mrb[0].mxu0
  %2500 = vdwg.mxu0
  %2501 = vmatprep.subr.mxu0 0.0
  %v2502 = vand.u32 %v2218, 4294901760
  %v2503 = vsub.f32 %v2218, %v2502
  %2504 = vmatpush1.msra.mxu0 %v2503
  %2505 = vmatprep.subr.mxu0 0.0
  %v2506 = vand.u32 %v2224, 4294901760
  %v2507 = vsub.f32 %v2224, %v2506
  %2508 = vmatpush1.msra.mxu0 %v2507
  %2509 = vmatprep.subr.mxu0 0.0
  %v2510 = vand.u32 %v2230, 4294901760
  %v2511 = vsub.f32 %v2230, %v2510
  %2512 = vmatpush1.msra.mxu0 %v2511
  %2513 = vmatprep.subr.mxu0 0.0
  %v2514 = vand.u32 %v2236, 4294901760
  %v2515 = vsub.f32 %v2236, %v2514
  %2516 = vmatpush1.msra.mxu0 %v2515
  %2517 = vmatprep.subr.mxu0 0.0
  %2518 = vmatpush1.msra.mxu0 0.0
  %2519 = vmatprep.subr.mxu0 0.0
  %2520 = vmatpush1.msra.mxu0 0.0
  %2521 = vmatprep.subr.mxu0 0.0
  %2522 = vmatpush1.msra.mxu0 0.0
  %2523 = vmatprep.subr.mxu0 0.0
  %2524 = vmatpush1.msra.mxu0 0.0
  %2525 = vmatprep.subr.mxu0 0.0
  %2526 = vmatpush1.msra.mxu0 0.0
  %2527 = vmatprep.subr.mxu0 0.0
  %2528 = vmatpush1.msra.mxu0 0.0
  %2529 = vmatprep.subr.mxu0 0.0
  %2530 = vmatpush1.msra.mxu0 0.0
  %2531 = vmatprep.subr.mxu0 0.0
  %2532 = vmatpush1.msra.mxu0 0.0
  %2533 = vmatprep.subr.mxu0 0.0
  %2534 = vmatpush1.msra.mxu0 0.0
  %2535 = vmatprep.subr.mxu0 0.0
  %2536 = vmatpush1.msra.mxu0 0.0
  %2537 = vmatprep.subr.mxu0 0.0
  %2538 = vmatpush1.msra.mxu0 0.0
  %2539 = vmatprep.subr.mxu0 0.0
  %2540 = vmatpush1.msra.mxu0 0.0
  %2541 = vmatprep.subr.mxu0 0.0
  %2542 = vmatpush1.msra.mxu0 0.0
  %2543 = vmatprep.subr.mxu0 0.0
  %2544 = vmatpush1.msra.mxu0 0.0
  %2545 = vmatprep.subr.mxu0 0.0
  %2546 = vmatpush1.msra.mxu0 0.0
  %2547 = vmatprep.subr.mxu0 0.0
  %2548 = vmatpush1.msra.mxu0 0.0
  %2549 = vmatprep.subr.mxu0 0.0
  %2550 = vmatpush1.msra.mxu0 0.0
  %2551 = vmatprep.subr.mxu0 0.0
  %2552 = vmatpush1.msra.mxu0 0.0
  %2553 = vmatprep.subr.mxu0 0.0
  %2554 = vmatpush1.msra.mxu0 0.0
  %2555 = vmatprep.subr.mxu0 0.0
  %2556 = vmatpush1.msra.mxu0 0.0
  %2557 = vmatprep.subr.mxu0 0.0
  %2558 = vmatpush1.msra.mxu0 0.0
  %2559 = vmatprep.subr.mxu0 0.0
  %2560 = vmatpush1.msra.mxu0 0.0
  %2561 = vmatprep.subr.mxu0 0.0
  %2562 = vmatpush1.msra.mxu0 0.0
  %2563 = vmatprep.subr.mxu0 0.0
  %2564 = vmatpush1.msra.mxu0 0.0
  %2565 = vmatprep.subr.mxu0 0.0
  %2566 = vmatpush1.msra.mxu0 0.0
  %2567 = vmatprep.subr.mxu0 0.0
  %2568 = vmatpush1.msra.mxu0 0.0
  %2569 = vmatprep.subr.mxu0 0.0
  %2570 = vmatpush1.msra.mxu0 0.0
  %2571 = vmatprep.subr.mxu0 0.0
  %2572 = vmatpush1.msra.mxu0 0.0
  %2573 = vmatprep.mubr.f32.mxu0 0.0
  %v2574 = vand.u32 %v2272, 4294901760
  %v2575 = vsub.f32 %v2272, %v2574
  %2576 = vmatmul.mubr.f32.gmra.mrb[0].mxu0 %v2575
  %v2577 = vpop.f32.mrb[0].mxu0
  %v2578 = vadd.f32 %v2480, %v2577
  %v2579 = vpop.f32.mrb[0].mxu0
  %2580 = vmatprep.mubr.f32.mxu0 0.0
  %v2581 = vand.u32 %v2275, 4294901760
  %v2582 = vsub.f32 %v2275, %v2581
  %2583 = vmatmul.mubr.f32.gmra.mrb[0].mxu0 %v2582
  %v2584 = vpop.f32.mrb[0].mxu0
  %v2585 = vadd.f32 %v2486, %v2584
  %v2586 = vpop.f32.mrb[0].mxu0
  %2587 = vmatprep.mubr.f32.mxu0 0.0
  %v2588 = vand.u32 %v2278, 4294901760
  %v2589 = vsub.f32 %v2278, %v2588
  %2590 = vmatmul.mubr.f32.gmra.mrb[0].mxu0 %v2589
  %v2591 = vpop.f32.mrb[0].mxu0
  %v2592 = vadd.f32 %v2492, %v2591
  %v2593 = vpop.f32.mrb[0].mxu0
  %2594 = vmatprep.mubr.f32.mxu0 0.0
  %v2595 = vand.u32 %v2281, 4294901760
  %v2596 = vsub.f32 %v2281, %v2595
  %2597 = vmatmul.mubr.f32.gmra.mrb[0].mxu0 %v2596
  %v2598 = vpop.f32.mrb[0].mxu0
  %v2599 = vadd.f32 %v2498, %v2598
  %v2600 = vpop.f32.mrb[0].mxu0
  %2601 = vdwg.mxu0
  %2602 = vmatprep.subr.mxu0 0.0
  %v2603 = vand.u32 %v2218, 4294901760
  %2604 = vmatpush1.msra.mxu0 %v2603
  %2605 = vmatprep.subr.mxu0 0.0
  %v2606 = vand.u32 %v2224, 4294901760
  %2607 = vmatpush1.msra.mxu0 %v2606
  %2608 = vmatprep.subr.mxu0 0.0
  %v2609 = vand.u32 %v2230, 4294901760
  %2610 = vmatpush1.msra.mxu0 %v2609
  %2611 = vmatprep.subr.mxu0 0.0
  %v2612 = vand.u32 %v2236, 4294901760
  %2613 = vmatpush1.msra.mxu0 %v2612
  %2614 = vmatprep.subr.mxu0 0.0
  %2615 = vmatpush1.msra.mxu0 0.0
  %2616 = vmatprep.subr.mxu0 0.0
  %2617 = vmatpush1.msra.mxu0 0.0
  %2618 = vmatprep.subr.mxu0 0.0
  %2619 = vmatpush1.msra.mxu0 0.0
  %2620 = vmatprep.subr.mxu0 0.0
  %2621 = vmatpush1.msra.mxu0 0.0
  %2622 = vmatprep.subr.mxu0 0.0
  %2623 = vmatpush1.msra.mxu0 0.0
  %2624 = vmatprep.subr.mxu0 0.0
  %2625 = vmatpush1.msra.mxu0 0.0
  %2626 = vmatprep.subr.mxu0 0.0
  %2627 = vmatpush1.msra.mxu0 0.0
  %2628 = vmatprep.subr.mxu0 0.0
  %2629 = vmatpush1.msra.mxu0 0.0
  %2630 = vmatprep.subr.mxu0 0.0
  %2631 = vmatpush1.msra.mxu0 0.0
  %2632 = vmatprep.subr.mxu0 0.0
  %2633 = vmatpush1.msra.mxu0 0.0
  %2634 = vmatprep.subr.mxu0 0.0
  %2635 = vmatpush1.msra.mxu0 0.0
  %2636 = vmatprep.subr.mxu0 0.0
  %2637 = vmatpush1.msra.mxu0 0.0
  %2638 = vmatprep.subr.mxu0 0.0
  %2639 = vmatpush1.msra.mxu0 0.0
  %2640 = vmatprep.subr.mxu0 0.0
  %2641 = vmatpush1.msra.mxu0 0.0
  %2642 = vmatprep.subr.mxu0 0.0
  %2643 = vmatpush1.msra.mxu0 0.0
  %2644 = vmatprep.subr.mxu0 0.0
  %2645 = vmatpush1.msra.mxu0 0.0
  %2646 = vmatprep.subr.mxu0 0.0
  %2647 = vmatpush1.msra.mxu0 0.0
  %2648 = vmatprep.subr.mxu0 0.0
  %2649 = vmatpush1.msra.mxu0 0.0
  %2650 = vmatprep.subr.mxu0 0.0
  %2651 = vmatpush1.msra.mxu0 0.0
  %2652 = vmatprep.subr.mxu0 0.0
  %2653 = vmatpush1.msra.mxu0 0.0
  %2654 = vmatprep.subr.mxu0 0.0
  %2655 = vmatpush1.msra.mxu0 0.0
  %2656 = vmatprep.subr.mxu0 0.0
  %2657 = vmatpush1.msra.mxu0 0.0
  %2658 = vmatprep.subr.mxu0 0.0
  %2659 = vmatpush1.msra.mxu0 0.0
  %2660 = vmatprep.subr.mxu0 0.0
  %2661 = vmatpush1.msra.mxu0 0.0
  %2662 = vmatprep.subr.mxu0 0.0
  %2663 = vmatpush1.msra.mxu0 0.0
  %2664 = vmatprep.subr.mxu0 0.0
  %2665 = vmatpush1.msra.mxu0 0.0
  %2666 = vmatprep.subr.mxu0 0.0
  %2667 = vmatpush1.msra.mxu0 0.0
  %2668 = vmatprep.subr.mxu0 0.0
  %2669 = vmatpush1.msra.mxu0 0.0
  %2670 = vmatprep.mubr.f32.mxu0 0.0
  %v2671 = vand.u32 %v2272, 4294901760
  %v2672 = vsub.f32 %v2272, %v2671
  %v2673 = vand.u32 %v2672, 4294901760
  %2674 = vmatmul.mubr.f32.gmra.mrb[0].mxu0 %v2673
  %v2675 = vpop.f32.mrb[0].mxu0
  %v2676 = vadd.f32 %v2578, %v2675
  %v2677 = vpop.f32.mrb[0].mxu0
  %2678 = vmatprep.mubr.f32.mxu0 0.0
  %v2679 = vand.u32 %v2275, 4294901760
  %v2680 = vsub.f32 %v2275, %v2679
  %v2681 = vand.u32 %v2680, 4294901760
  %2682 = vmatmul.mubr.f32.gmra.mrb[0].mxu0 %v2681
  %v2683 = vpop.f32.mrb[0].mxu0
  %v2684 = vadd.f32 %v2585, %v2683
  %v2685 = vpop.f32.mrb[0].mxu0
  %2686 = vmatprep.mubr.f32.mxu0 0.0
  %v2687 = vand.u32 %v2278, 4294901760
  %v2688 = vsub.f32 %v2278, %v2687
  %v2689 = vand.u32 %v2688, 4294901760
  %2690 = vmatmul.mubr.f32.gmra.mrb[0].mxu0 %v2689
  %v2691 = vpop.f32.mrb[0].mxu0
  %v2692 = vadd.f32 %v2592, %v2691
  %v2693 = vpop.f32.mrb[0].mxu0
  %2694 = vmatprep.mubr.f32.mxu0 0.0
  %v2695 = vand.u32 %v2281, 4294901760
  %v2696 = vsub.f32 %v2281, %v2695
  %v2697 = vand.u32 %v2696, 4294901760
  %2698 = vmatmul.mubr.f32.gmra.mrb[0].mxu0 %v2697
  %v2699 = vpop.f32.mrb[0].mxu0
  %v2700 = vadd.f32 %v2599, %v2699
  %v2701 = vpop.f32.mrb[0].mxu0
  %2702 = vdwg.mxu0
  %2703 = vmatprep.subr.mxu0 0.0
  %v2704 = vand.u32 %v2218, 4294901760
  %v2705 = vsub.f32 %v2218, %v2704
  %v2706 = vand.u32 %v2705, 4294901760
  %2707 = vmatpush1.msra.mxu0 %v2706
  %2708 = vmatprep.subr.mxu0 0.0
  %v2709 = vand.u32 %v2224, 4294901760
  %v2710 = vsub.f32 %v2224, %v2709
  %v2711 = vand.u32 %v2710, 4294901760
  %2712 = vmatpush1.msra.mxu0 %v2711
  %2713 = vmatprep.subr.mxu0 0.0
  %v2714 = vand.u32 %v2230, 4294901760
  %v2715 = vsub.f32 %v2230, %v2714
  %v2716 = vand.u32 %v2715, 4294901760
  %2717 = vmatpush1.msra.mxu0 %v2716
  %2718 = vmatprep.subr.mxu0 0.0
  %v2719 = vand.u32 %v2236, 4294901760
  %v2720 = vsub.f32 %v2236, %v2719
  %v2721 = vand.u32 %v2720, 4294901760
  %2722 = vmatpush1.msra.mxu0 %v2721
  %2723 = vmatprep.subr.mxu0 0.0
  %2724 = vmatpush1.msra.mxu0 0.0
  %2725 = vmatprep.subr.mxu0 0.0
  %2726 = vmatpush1.msra.mxu0 0.0
  %2727 = vmatprep.subr.mxu0 0.0
  %2728 = vmatpush1.msra.mxu0 0.0
  %2729 = vmatprep.subr.mxu0 0.0
  %2730 = vmatpush1.msra.mxu0 0.0
  %2731 = vmatprep.subr.mxu0 0.0
  %2732 = vmatpush1.msra.mxu0 0.0
  %2733 = vmatprep.subr.mxu0 0.0
  %2734 = vmatpush1.msra.mxu0 0.0
  %2735 = vmatprep.subr.mxu0 0.0
  %2736 = vmatpush1.msra.mxu0 0.0
  %2737 = vmatprep.subr.mxu0 0.0
  %2738 = vmatpush1.msra.mxu0 0.0
  %2739 = vmatprep.subr.mxu0 0.0
  %2740 = vmatpush1.msra.mxu0 0.0
  %2741 = vmatprep.subr.mxu0 0.0
  %2742 = vmatpush1.msra.mxu0 0.0
  %2743 = vmatprep.subr.mxu0 0.0
  %2744 = vmatpush1.msra.mxu0 0.0
  %2745 = vmatprep.subr.mxu0 0.0
  %2746 = vmatpush1.msra.mxu0 0.0
  %2747 = vmatprep.subr.mxu0 0.0
  %2748 = vmatpush1.msra.mxu0 0.0
  %2749 = vmatprep.subr.mxu0 0.0
  %2750 = vmatpush1.msra.mxu0 0.0
  %2751 = vmatprep.subr.mxu0 0.0
  %2752 = vmatpush1.msra.mxu0 0.0
  %2753 = vmatprep.subr.mxu0 0.0
  %2754 = vmatpush1.msra.mxu0 0.0
  %2755 = vmatprep.subr.mxu0 0.0
  %2756 = vmatpush1.msra.mxu0 0.0
  %2757 = vmatprep.subr.mxu0 0.0
  %2758 = vmatpush1.msra.mxu0 0.0
  %2759 = vmatprep.subr.mxu0 0.0
  %2760 = vmatpush1.msra.mxu0 0.0
  %2761 = vmatprep.subr.mxu0 0.0
  %2762 = vmatpush1.msra.mxu0 0.0
  %2763 = vmatprep.subr.mxu0 0.0
  %2764 = vmatpush1.msra.mxu0 0.0
  %2765 = vmatprep.subr.mxu0 0.0
  %2766 = vmatpush1.msra.mxu0 0.0
  %2767 = vmatprep.subr.mxu0 0.0
  %2768 = vmatpush1.msra.mxu0 0.0
  %2769 = vmatprep.subr.mxu0 0.0
  %2770 = vmatpush1.msra.mxu0 0.0
  %2771 = vmatprep.subr.mxu0 0.0
  %2772 = vmatpush1.msra.mxu0 0.0
  %2773 = vmatprep.subr.mxu0 0.0
  %2774 = vmatpush1.msra.mxu0 0.0
  %2775 = vmatprep.subr.mxu0 0.0
  %2776 = vmatpush1.msra.mxu0 0.0
  %2777 = vmatprep.subr.mxu0 0.0
  %2778 = vmatpush1.msra.mxu0 0.0
  %2779 = vmatprep.mubr.f32.mxu0 0.0
  %v2780 = vand.u32 %v2272, 4294901760
  %2781 = vmatmul.mubr.f32.gmra.mrb[0].mxu0 %v2780
  %v2782 = vpop.f32.mrb[0].mxu0
  %v2783 = vadd.f32 %v2676, %v2782
  %v2784 = vpop.f32.mrb[0].mxu0
  %2785 = vmatprep.mubr.f32.mxu0 0.0
  %v2786 = vand.u32 %v2275, 4294901760
  %2787 = vmatmul.mubr.f32.gmra.mrb[0].mxu0 %v2786
  %v2788 = vpop.f32.mrb[0].mxu0
  %v2789 = vadd.f32 %v2684, %v2788
  %v2790 = vpop.f32.mrb[0].mxu0
  %2791 = vmatprep.mubr.f32.mxu0 0.0
  %v2792 = vand.u32 %v2278, 4294901760
  %2793 = vmatmul.mubr.f32.gmra.mrb[0].mxu0 %v2792
  %v2794 = vpop.f32.mrb[0].mxu0
  %v2795 = vadd.f32 %v2692, %v2794
  %v2796 = vpop.f32.mrb[0].mxu0
  %2797 = vmatprep.mubr.f32.mxu0 0.0
  %v2798 = vand.u32 %v2281, 4294901760
  %2799 = vmatmul.mubr.f32.gmra.mrb[0].mxu0 %v2798
  %v2800 = vpop.f32.mrb[0].mxu0
  %v2801 = vadd.f32 %v2700, %v2800
  %v2802 = vpop.f32.mrb[0].mxu0
  %2803 = vdwg.mxu0
  %2804 = vmatprep.subr.mxu0 0.0
  %v2805 = vand.u32 %v2218, 4294901760
  %2806 = vmatpush1.msra.mxu0 %v2805
  %2807 = vmatprep.subr.mxu0 0.0
  %v2808 = vand.u32 %v2224, 4294901760
  %2809 = vmatpush1.msra.mxu0 %v2808
  %2810 = vmatprep.subr.mxu0 0.0
  %v2811 = vand.u32 %v2230, 4294901760
  %2812 = vmatpush1.msra.mxu0 %v2811
  %2813 = vmatprep.subr.mxu0 0.0
  %v2814 = vand.u32 %v2236, 4294901760
  %2815 = vmatpush1.msra.mxu0 %v2814
  %2816 = vmatprep.subr.mxu0 0.0
  %2817 = vmatpush1.msra.mxu0 0.0
  %2818 = vmatprep.subr.mxu0 0.0
  %2819 = vmatpush1.msra.mxu0 0.0
  %2820 = vmatprep.subr.mxu0 0.0
  %2821 = vmatpush1.msra.mxu0 0.0
  %2822 = vmatprep.subr.mxu0 0.0
  %2823 = vmatpush1.msra.mxu0 0.0
  %2824 = vmatprep.subr.mxu0 0.0
  %2825 = vmatpush1.msra.mxu0 0.0
  %2826 = vmatprep.subr.mxu0 0.0
  %2827 = vmatpush1.msra.mxu0 0.0
  %2828 = vmatprep.subr.mxu0 0.0
  %2829 = vmatpush1.msra.mxu0 0.0
  %2830 = vmatprep.subr.mxu0 0.0
  %2831 = vmatpush1.msra.mxu0 0.0
  %2832 = vmatprep.subr.mxu0 0.0
  %2833 = vmatpush1.msra.mxu0 0.0
  %2834 = vmatprep.subr.mxu0 0.0
  %2835 = vmatpush1.msra.mxu0 0.0
  %2836 = vmatprep.subr.mxu0 0.0
  %2837 = vmatpush1.msra.mxu0 0.0
  %2838 = vmatprep.subr.mxu0 0.0
  %2839 = vmatpush1.msra.mxu0 0.0
  %2840 = vmatprep.subr.mxu0 0.0
  %2841 = vmatpush1.msra.mxu0 0.0
  %2842 = vmatprep.subr.mxu0 0.0
  %2843 = vmatpush1.msra.mxu0 0.0
  %2844 = vmatprep.subr.mxu0 0.0
  %2845 = vmatpush1.msra.mxu0 0.0
  %2846 = vmatprep.subr.mxu0 0.0
  %2847 = vmatpush1.msra.mxu0 0.0
  %2848 = vmatprep.subr.mxu0 0.0
  %2849 = vmatpush1.msra.mxu0 0.0
  %2850 = vmatprep.subr.mxu0 0.0
  %2851 = vmatpush1.msra.mxu0 0.0
  %2852 = vmatprep.subr.mxu0 0.0
  %2853 = vmatpush1.msra.mxu0 0.0
  %2854 = vmatprep.subr.mxu0 0.0
  %2855 = vmatpush1.msra.mxu0 0.0
  %2856 = vmatprep.subr.mxu0 0.0
  %2857 = vmatpush1.msra.mxu0 0.0
  %2858 = vmatprep.subr.mxu0 0.0
  %2859 = vmatpush1.msra.mxu0 0.0
  %2860 = vmatprep.subr.mxu0 0.0
  %2861 = vmatpush1.msra.mxu0 0.0
  %2862 = vmatprep.subr.mxu0 0.0
  %2863 = vmatpush1.msra.mxu0 0.0
  %2864 = vmatprep.subr.mxu0 0.0
  %2865 = vmatpush1.msra.mxu0 0.0
  %2866 = vmatprep.subr.mxu0 0.0
  %2867 = vmatpush1.msra.mxu0 0.0
  %2868 = vmatprep.subr.mxu0 0.0
  %2869 = vmatpush1.msra.mxu0 0.0
  %2870 = vmatprep.subr.mxu0 0.0
  %2871 = vmatpush1.msra.mxu0 0.0
  %2872 = vmatprep.mubr.f32.mxu0 0.0
  %v2873 = vand.u32 %v2272, 4294901760
  %2874 = vmatmul.mubr.f32.gmra.mrb[0].mxu0 %v2873
  %v2875 = vpop.f32.mrb[0].mxu0
  %v2876 = vadd.f32 %v2783, %v2875
  %v2877 = vpop.f32.mrb[0].mxu0
  %2878 = vmatprep.mubr.f32.mxu0 0.0
  %v2879 = vand.u32 %v2275, 4294901760
  %2880 = vmatmul.mubr.f32.gmra.mrb[0].mxu0 %v2879
  %v2881 = vpop.f32.mrb[0].mxu0
  %v2882 = vadd.f32 %v2789, %v2881
  %v2883 = vpop.f32.mrb[0].mxu0
  %2884 = vmatprep.mubr.f32.mxu0 0.0
  %v2885 = vand.u32 %v2278, 4294901760
  %2886 = vmatmul.mubr.f32.gmra.mrb[0].mxu0 %v2885
  %v2887 = vpop.f32.mrb[0].mxu0
  %v2888 = vadd.f32 %v2795, %v2887
  %v2889 = vpop.f32.mrb[0].mxu0
  %2890 = vmatprep.mubr.f32.mxu0 0.0
  %v2891 = vand.u32 %v2281, 4294901760
  %2892 = vmatmul.mubr.f32.gmra.mrb[0].mxu0 %v2891
  %v2893 = vpop.f32.mrb[0].mxu0
  %v2894 = vadd.f32 %v2801, %v2893
  %v2895 = vpop.f32.mrb[0].mxu0
  %2896 = vdwg.mxu0
  %v2897 = vround.ne.pseudo %v2876
  %v2898 = vround.ne.pseudo %v2882
  %v2899 = vround.ne.pseudo %v2888
  %v2900 = vround.ne.pseudo %v2894
  %v2901 = vadd.f32 %v2897, 128.0
  %v2902 = vadd.f32 %v2898, 128.0
  %v2903 = vadd.f32 %v2899, 128.0
  %v2904 = vadd.f32 %v2900, 128.0
  %2905 = vst [vmem:[%s5] sm:$0xff] %v2901
  %2906 = vst [vmem:[%s5 + $0x8] sm:$0xff] %v2902
  %2907 = vst [vmem:[%s5 + $0x10] sm:$0xff] %v2903
  %2908 = vst [vmem:[%s5 + $0x18] sm:$0xff] %v2904
  // Predicated region
  $region22: #{_jpeg_forward.1} parent=0 // pred_check
    _
  $region23: #{_jpeg_forward.1} parent=0 // pred_check_branch
    %2910 = sbr.rel (0) target = $region25
  $region24: #{_jpeg_forward.1} parent=0 // pred_region
    _
  $region25: #{_jpeg_forward.1} parent=0 // pred_fallthru
    _
  // Predicated region
  $region26: #{_jpeg_forward.1} parent=0 // pred_check
    _
  $region27: #{_jpeg_forward.1} parent=0 // pred_check_branch
    %2912 = sbr.rel (0) target = $region29
  $region28: #{_jpeg_forward.1} parent=0 // pred_region
    _
  $region29: #{_jpeg_forward.1} parent=0 // pred_fallthru
    _

</llo_original>
